<compile_context>
chip_gen: v7x
topology: tpu7x:2x2x1
jax: 0.10.0
libtpu: 0.0.40
codegen_flags: <defaults>
</compile_context>

<pallas_src>
import functools
import math

import jax
import jax.numpy as jnp
from jax.experimental import pallas as pl
from jax.experimental.pallas import tpu as pltpu


def _causal_attn_kernel(x_ref, wqkv_ref, bqkv_ref, wproj_ref, bproj_ref,
                        mask_ref, o_ref, *, batch, n_head, head_dim, seq_len):
    B, H, d, T = batch, n_head, head_dim, seq_len
    C = H * d

    x = x_ref[...]                                         # [B*T, C] bf16

    # ---- (1) merged QKV projection: one [B*T,C]@[C,3C] matmul, f32 acc -----
    # (1/sqrt(d) already folded into the Q columns of wqkv / bqkv.)
    qkv = jnp.dot(x, wqkv_ref[...],
                  preferred_element_type=jnp.float32)      # [B*T, 3C] f32
    qkv = qkv + bqkv_ref[...]                              # bias [1, 3C] f32

    mask = mask_ref[...]                                   # [T, T] additive causal bias

    # ---- (2) scores / softmax / att@V per (batch, head) --------------------
    # Heads are a small static Python unroll (H=4); q/k/v are static,
    # lane-aligned slices of the merged QKV result.  Batch is a leading batch
    # dim of 3-D einsums (proven lowering path).
    y_heads = []
    for h in range(H):
        q = qkv[:, 0 * C + h * d: 0 * C + (h + 1) * d]     # [B*T, d] (pre-scaled)
        k = qkv[:, 1 * C + h * d: 1 * C + (h + 1) * d]
        v = qkv[:, 2 * C + h * d: 2 * C + (h + 1) * d]
        q = q.reshape(B, T, d).astype(jnp.bfloat16)        # leading-dim split only
        k = k.reshape(B, T, d).astype(jnp.bfloat16)
        v = v.reshape(B, T, d).astype(jnp.bfloat16)

        s = jnp.einsum('btd,bsd->bts', q, k,
                       preferred_element_type=jnp.float32)  # [B, T, T] f32
        s = s + mask[None, :, :]

        # Numerically-stable softmax in f32; reciprocal on the EUP (approx).
        m = jnp.max(s, axis=-1, keepdims=True)
        p = jnp.exp(s - m)
        l = jnp.sum(p, axis=-1, keepdims=True)
        p = p * pl.reciprocal(l, approx=True)

        yh = jnp.einsum('bts,bsd->btd', p.astype(jnp.bfloat16), v,
                        preferred_element_type=jnp.float32)  # [B, T, d] f32
        y_heads.append(yh.reshape(B * T, d))

    # Head-merge: lane-concat back to [B*T, C] ((h, d) column order, matching
    # the PyTorch 'b h t d -> b t (h d)' rearrange).
    y = jnp.concatenate(y_heads, axis=-1)                   # [B*T, C] f32

    # ---- (3) fused output projection: one [B*T,C]@[C,C] matmul -------------
    out = jnp.dot(y.astype(jnp.bfloat16), wproj_ref[...],
                  preferred_element_type=jnp.float32)
    out = (out + bproj_ref[...]).astype(o_ref.dtype)        # [B*T, C]

    # ---- (4) lane-dense store ----------------------------------------------
    # o_ref is [B, T*C] (256 lanes): rows are placed with static lane-window
    # stores into VMEM, and the HBM writeback is a single dense DMA.
    for b in range(B):
        for t in range(T):
            row = b * T + t
            o_ref[b:b + 1, t * C:(t + 1) * C] = out[row:row + 1, :]


def causal_self_attention(x, w_qkv, b_qkv, w_proj, b_proj, *, n_head):
    """x: [B, T, C] f32; w_qkv: [C, 3C] (x @ W + b convention); b_qkv: [3C];
    w_proj: [C, C]; b_proj: [C]."""
    B, T, C = x.shape
    H = n_head
    d = C // H
    scale = 1.0 / math.sqrt(d)

    # ---- host-side (one-time) prep -----------------------------------------
    # Fold the attention scale into the Q block of the QKV projection.
    w_qkv_s = jnp.concatenate([w_qkv[:, :C] * scale, w_qkv[:, C:]],
                              axis=1).astype(jnp.bfloat16)           # [C, 3C]
    b_qkv_s = jnp.concatenate([b_qkv[:C] * scale, b_qkv[C:]]
                              ).reshape(1, 3 * C).astype(jnp.float32)  # [1, 3C]
    w_proj_b = w_proj.astype(jnp.bfloat16)                            # [C, C]
    b_proj2 = b_proj.reshape(1, C).astype(jnp.float32)                # [1, C]

    # Additive causal mask (0 / -1e30), grid-invariant input.
    row = jnp.arange(T)[:, None]
    col = jnp.arange(T)[None, :]
    causal_bias = jnp.where(row >= col, 0.0, -1e30).astype(jnp.float32)  # [T, T]

    # Flatten batch on the host; bf16 halves the activation DMA.
    x_flat = x.reshape(B * T, C).astype(jnp.bfloat16)                 # [B*T, C]

    kernel = functools.partial(_causal_attn_kernel,
                               batch=B, n_head=H, head_dim=d, seq_len=T)

    out_flat = pl.pallas_call(
        kernel,
        out_shape=jax.ShapeDtypeStruct((B, T * C), x.dtype),          # lane-dense
        grid_spec=pltpu.PrefetchScalarGridSpec(
            num_scalar_prefetch=0,
            grid=(1,),                                   # single step (no serial batch loop)
            in_specs=[
                pl.BlockSpec((B * T, C), lambda i: (0, 0)),      # x (flattened)
                pl.BlockSpec((C, 3 * C), lambda i: (0, 0)),      # W_qkv (Q pre-scaled)
                pl.BlockSpec((1, 3 * C), lambda i: (0, 0)),      # b_qkv
                pl.BlockSpec((C, C), lambda i: (0, 0)),          # W_proj
                pl.BlockSpec((1, C), lambda i: (0, 0)),          # b_proj
                pl.BlockSpec((T, T), lambda i: (0, 0)),          # causal bias
            ],
            out_specs=pl.BlockSpec((B, T * C), lambda i: (0, 0)),
        ),
        compiler_params=pltpu.CompilerParams(
            dimension_semantics=("arbitrary",)),
    )(x_flat, w_qkv_s, b_qkv_s, w_proj_b, b_proj2, causal_bias)

    return out_flat.reshape(B, T, C)                      # free host-side reshape


def _reference(x, w_qkv, b_qkv, w_proj, b_proj, n_head):
    """Pure-JAX f32 reference matching the PyTorch module semantics."""
    B, T, C = x.shape
    d = C // n_head
    qkv = x @ w_qkv + b_qkv
    q, k, v = qkv[..., :C], qkv[..., C:2 * C], qkv[..., 2 * C:]

    def split_heads(t):
        return t.reshape(B, T, n_head, d).transpose(0, 2, 1, 3)   # [B, H, T, d]

    q, k, v = map(split_heads, (q, k, v))
    att = (q @ k.transpose(0, 1, 3, 2)) * (1.0 / math.sqrt(d))
    mask = jnp.tril(jnp.ones((T, T), dtype=bool))
    att = jnp.where(mask[None, None], att, -jnp.inf)
    att = jax.nn.softmax(att, axis=-1)
    y = att @ v                                                   # [B, H, T, d]
    y = y.transpose(0, 2, 1, 3).reshape(B, T, C)
    return y @ w_proj + b_proj


if __name__ == "__main__":
    # Module config: transformer_dim=32, transformer_num_heads=4, input_length=8
    B, T, C, H = 2, 8, 32, 4

    key = jax.random.PRNGKey(0)
    kx, k1, k2, k3, k4 = jax.random.split(key, 5)

    x = jax.random.normal(kx, (B, T, C), dtype=jnp.float32)
    # nn.Linear(C, 3C): weight [3C, C]; stored here pre-transposed as [C, 3C]
    w_qkv = jax.random.normal(k1, (C, 3 * C), dtype=jnp.float32) * (1.0 / math.sqrt(C))
    b_qkv = jax.random.normal(k2, (3 * C,), dtype=jnp.float32) * 0.02
    # nn.Linear(C, C): stored pre-transposed as [C, C]
    w_proj = jax.random.normal(k3, (C, C), dtype=jnp.float32) * (1.0 / math.sqrt(C))
    b_proj = jax.random.normal(k4, (C,), dtype=jnp.float32) * 0.02

    y = causal_self_attention(x, w_qkv, b_qkv, w_proj, b_proj, n_head=H)
    y = jax.block_until_ready(y)

    y_ref = _reference(x, w_qkv, b_qkv, w_proj, b_proj, H)
    # bf16 MXU operands (f32 accumulation) -> relaxed tolerance vs f32 reference.
    assert jnp.allclose(y, y_ref, atol=5e-2, rtol=5e-2), "mismatch vs reference"

    print("KERNEL_OK")
</pallas_src>

<mosaic_0001>
module attributes {stable_mosaic.version = 11 : i64} {
  func.func @_causal_attn_kernel(%arg0: i32, %arg1: memref<16x32xbf16, #tpu.memory_space<vmem>>, %arg2: memref<32x96xbf16, #tpu.memory_space<vmem>>, %arg3: memref<1x96xf32, #tpu.memory_space<vmem>>, %arg4: memref<32x32xbf16, #tpu.memory_space<vmem>>, %arg5: memref<1x32xf32, #tpu.memory_space<vmem>>, %arg6: memref<8x8xf32, #tpu.memory_space<vmem>>, %arg7: memref<2x256xf32, #tpu.memory_space<vmem>>) attributes {dimension_semantics = [#tpu.dimension_semantics<arbitrary>], iteration_bounds = array<i64: 1>, scalar_prefetch = 0 : i64, scratch_operands = 0 : i64, tpu.core_type = #tpu.core_type<tc>, window_params = [{pipeline_mode = #tpu.pipeline_mode<synchronous>, transform_indices = @transform_0, window_bounds = array<i64: 16, 32>}, {pipeline_mode = #tpu.pipeline_mode<synchronous>, transform_indices = @transform_1, window_bounds = array<i64: 32, 96>}, {pipeline_mode = #tpu.pipeline_mode<synchronous>, transform_indices = @transform_2, window_bounds = array<i64: 1, 96>}, {pipeline_mode = #tpu.pipeline_mode<synchronous>, transform_indices = @transform_3, window_bounds = array<i64: 32, 32>}, {pipeline_mode = #tpu.pipeline_mode<synchronous>, transform_indices = @transform_4, window_bounds = array<i64: 1, 32>}, {pipeline_mode = #tpu.pipeline_mode<synchronous>, transform_indices = @transform_5, window_bounds = array<i64: 8, 8>}, {pipeline_mode = #tpu.pipeline_mode<synchronous>, transform_indices = @transform_6, window_bounds = array<i64: 2, 256>}]} {
    %c0 = arith.constant 0 : index
    %c0_0 = arith.constant 0 : index
    %0 = vector.load %arg1[%c0, %c0_0] : memref<16x32xbf16, #tpu.memory_space<vmem>>, vector<16x32xbf16>
    %c0_1 = arith.constant 0 : index
    %c0_2 = arith.constant 0 : index
    %1 = vector.load %arg2[%c0_1, %c0_2] : memref<32x96xbf16, #tpu.memory_space<vmem>>, vector<32x96xbf16>
    %cst = arith.constant dense<0.000000e+00> : vector<16x96xf32>
    %2 = tpu.matmul %0, %1, %cst {dimension_numbers = #tpu.dot_dimension_numbers<[1], [0], [0], [1], [0, 0, 1, 1], [], []>} : vector<16x32xbf16>, vector<32x96xbf16>, vector<16x96xf32> -> vector<16x96xf32>
    %c0_3 = arith.constant 0 : index
    %c0_4 = arith.constant 0 : index
    %3 = vector.load %arg3[%c0_3, %c0_4] : memref<1x96xf32, #tpu.memory_space<vmem>>, vector<1x96xf32>
    %4 = vector.broadcast %3 : vector<1x96xf32> to vector<16x96xf32>
    %5 = arith.addf %2, %4 : vector<16x96xf32>
    %c0_5 = arith.constant 0 : index
    %c0_6 = arith.constant 0 : index
    %6 = vector.load %arg6[%c0_5, %c0_6] : memref<8x8xf32, #tpu.memory_space<vmem>>, vector<8x8xf32>
    %7 = vector.extract_strided_slice %5 {offsets = [0, 0], sizes = [16, 8], strides = [1, 1]} : vector<16x96xf32> to vector<16x8xf32>
    %8 = vector.extract_strided_slice %5 {offsets = [0, 32], sizes = [16, 8], strides = [1, 1]} : vector<16x96xf32> to vector<16x8xf32>
    %9 = vector.extract_strided_slice %5 {offsets = [0, 64], sizes = [16, 8], strides = [1, 1]} : vector<16x96xf32> to vector<16x8xf32>
    %10 = vector.shape_cast %7 : vector<16x8xf32> to vector<2x8x8xf32>
    %11 = arith.truncf %10 : vector<2x8x8xf32> to vector<2x8x8xbf16>
    %12 = vector.shape_cast %8 : vector<16x8xf32> to vector<2x8x8xf32>
    %13 = arith.truncf %12 : vector<2x8x8xf32> to vector<2x8x8xbf16>
    %14 = vector.shape_cast %9 : vector<16x8xf32> to vector<2x8x8xf32>
    %15 = arith.truncf %14 : vector<2x8x8xf32> to vector<2x8x8xbf16>
    "tpu.trace_start"() <{level = 10 : i32, message = "btd,bsd->bts"}> : () -> ()
    %cst_7 = arith.constant dense<0.000000e+00> : vector<2x8x8xf32>
    %16 = tpu.matmul %11, %13, %cst_7 {dimension_numbers = #tpu.dot_dimension_numbers<[2], [2], [1], [1], [0, 0, 0, 1, 1, 1], [0], [0]>} : vector<2x8x8xbf16>, vector<2x8x8xbf16>, vector<2x8x8xf32> -> vector<2x8x8xf32>
    "tpu.trace_stop"() : () -> ()
    %17 = vector.shape_cast %6 : vector<8x8xf32> to vector<1x8x8xf32>
    %18 = vector.broadcast %17 : vector<1x8x8xf32> to vector<2x8x8xf32>
    %19 = arith.addf %16, %18 : vector<2x8x8xf32>
    %cst_8 = arith.constant dense<0xFF800000> : vector<2x8xf32>
    %20 = vector.multi_reduction <maximumf>, %19, %cst_8 [2] : vector<2x8x8xf32> to vector<2x8xf32>
    %21 = vector.shape_cast %20 : vector<2x8xf32> to vector<2x8x1xf32>
    %22 = vector.broadcast %21 : vector<2x8x1xf32> to vector<2x8x8xf32>
    %23 = arith.subf %19, %22 : vector<2x8x8xf32>
    %24 = math.exp %23 : vector<2x8x8xf32>
    %cst_9 = arith.constant dense<0.000000e+00> : vector<2x8xf32>
    %25 = vector.multi_reduction <add>, %24, %cst_9 [2] : vector<2x8x8xf32> to vector<2x8xf32>
    %26 = vector.shape_cast %25 : vector<2x8xf32> to vector<2x8x1xf32>
    %27 = tpu.reciprocal %26 {approx = true} : vector<2x8x1xf32> -> vector<2x8x1xf32>
    %28 = vector.broadcast %27 : vector<2x8x1xf32> to vector<2x8x8xf32>
    %29 = arith.mulf %24, %28 : vector<2x8x8xf32>
    %30 = arith.truncf %29 : vector<2x8x8xf32> to vector<2x8x8xbf16>
    "tpu.trace_start"() <{level = 10 : i32, message = "bts,bsd->btd"}> : () -> ()
    %cst_10 = arith.constant dense<0.000000e+00> : vector<2x8x8xf32>
    %31 = tpu.matmul %30, %15, %cst_10 {dimension_numbers = #tpu.dot_dimension_numbers<[2], [1], [1], [2], [0, 0, 0, 1, 1, 2], [0], [0]>} : vector<2x8x8xbf16>, vector<2x8x8xbf16>, vector<2x8x8xf32> -> vector<2x8x8xf32>
    "tpu.trace_stop"() : () -> ()
    %32 = vector.shape_cast %31 : vector<2x8x8xf32> to vector<16x8xf32>
    %33 = vector.extract_strided_slice %5 {offsets = [0, 8], sizes = [16, 8], strides = [1, 1]} : vector<16x96xf32> to vector<16x8xf32>
    %34 = vector.extract_strided_slice %5 {offsets = [0, 40], sizes = [16, 8], strides = [1, 1]} : vector<16x96xf32> to vector<16x8xf32>
    %35 = vector.extract_strided_slice %5 {offsets = [0, 72], sizes = [16, 8], strides = [1, 1]} : vector<16x96xf32> to vector<16x8xf32>
    %36 = vector.shape_cast %33 : vector<16x8xf32> to vector<2x8x8xf32>
    %37 = arith.truncf %36 : vector<2x8x8xf32> to vector<2x8x8xbf16>
    %38 = vector.shape_cast %34 : vector<16x8xf32> to vector<2x8x8xf32>
    %39 = arith.truncf %38 : vector<2x8x8xf32> to vector<2x8x8xbf16>
    %40 = vector.shape_cast %35 : vector<16x8xf32> to vector<2x8x8xf32>
    %41 = arith.truncf %40 : vector<2x8x8xf32> to vector<2x8x8xbf16>
    "tpu.trace_start"() <{level = 10 : i32, message = "btd,bsd->bts"}> : () -> ()
    %cst_11 = arith.constant dense<0.000000e+00> : vector<2x8x8xf32>
    %42 = tpu.matmul %37, %39, %cst_11 {dimension_numbers = #tpu.dot_dimension_numbers<[2], [2], [1], [1], [0, 0, 0, 1, 1, 1], [0], [0]>} : vector<2x8x8xbf16>, vector<2x8x8xbf16>, vector<2x8x8xf32> -> vector<2x8x8xf32>
    "tpu.trace_stop"() : () -> ()
    %43 = vector.shape_cast %6 : vector<8x8xf32> to vector<1x8x8xf32>
    %44 = vector.broadcast %43 : vector<1x8x8xf32> to vector<2x8x8xf32>
    %45 = arith.addf %42, %44 : vector<2x8x8xf32>
    %cst_12 = arith.constant dense<0xFF800000> : vector<2x8xf32>
    %46 = vector.multi_reduction <maximumf>, %45, %cst_12 [2] : vector<2x8x8xf32> to vector<2x8xf32>
    %47 = vector.shape_cast %46 : vector<2x8xf32> to vector<2x8x1xf32>
    %48 = vector.broadcast %47 : vector<2x8x1xf32> to vector<2x8x8xf32>
    %49 = arith.subf %45, %48 : vector<2x8x8xf32>
    %50 = math.exp %49 : vector<2x8x8xf32>
    %cst_13 = arith.constant dense<0.000000e+00> : vector<2x8xf32>
    %51 = vector.multi_reduction <add>, %50, %cst_13 [2] : vector<2x8x8xf32> to vector<2x8xf32>
    %52 = vector.shape_cast %51 : vector<2x8xf32> to vector<2x8x1xf32>
    %53 = tpu.reciprocal %52 {approx = true} : vector<2x8x1xf32> -> vector<2x8x1xf32>
    %54 = vector.broadcast %53 : vector<2x8x1xf32> to vector<2x8x8xf32>
    %55 = arith.mulf %50, %54 : vector<2x8x8xf32>
    %56 = arith.truncf %55 : vector<2x8x8xf32> to vector<2x8x8xbf16>
    "tpu.trace_start"() <{level = 10 : i32, message = "bts,bsd->btd"}> : () -> ()
    %cst_14 = arith.constant dense<0.000000e+00> : vector<2x8x8xf32>
    %57 = tpu.matmul %56, %41, %cst_14 {dimension_numbers = #tpu.dot_dimension_numbers<[2], [1], [1], [2], [0, 0, 0, 1, 1, 2], [0], [0]>} : vector<2x8x8xbf16>, vector<2x8x8xbf16>, vector<2x8x8xf32> -> vector<2x8x8xf32>
    "tpu.trace_stop"() : () -> ()
    %58 = vector.shape_cast %57 : vector<2x8x8xf32> to vector<16x8xf32>
    %59 = vector.extract_strided_slice %5 {offsets = [0, 16], sizes = [16, 8], strides = [1, 1]} : vector<16x96xf32> to vector<16x8xf32>
    %60 = vector.extract_strided_slice %5 {offsets = [0, 48], sizes = [16, 8], strides = [1, 1]} : vector<16x96xf32> to vector<16x8xf32>
    %61 = vector.extract_strided_slice %5 {offsets = [0, 80], sizes = [16, 8], strides = [1, 1]} : vector<16x96xf32> to vector<16x8xf32>
    %62 = vector.shape_cast %59 : vector<16x8xf32> to vector<2x8x8xf32>
    %63 = arith.truncf %62 : vector<2x8x8xf32> to vector<2x8x8xbf16>
    %64 = vector.shape_cast %60 : vector<16x8xf32> to vector<2x8x8xf32>
    %65 = arith.truncf %64 : vector<2x8x8xf32> to vector<2x8x8xbf16>
    %66 = vector.shape_cast %61 : vector<16x8xf32> to vector<2x8x8xf32>
    %67 = arith.truncf %66 : vector<2x8x8xf32> to vector<2x8x8xbf16>
    "tpu.trace_start"() <{level = 10 : i32, message = "btd,bsd->bts"}> : () -> ()
    %cst_15 = arith.constant dense<0.000000e+00> : vector<2x8x8xf32>
    %68 = tpu.matmul %63, %65, %cst_15 {dimension_numbers = #tpu.dot_dimension_numbers<[2], [2], [1], [1], [0, 0, 0, 1, 1, 1], [0], [0]>} : vector<2x8x8xbf16>, vector<2x8x8xbf16>, vector<2x8x8xf32> -> vector<2x8x8xf32>
    "tpu.trace_stop"() : () -> ()
    %69 = vector.shape_cast %6 : vector<8x8xf32> to vector<1x8x8xf32>
    %70 = vector.broadcast %69 : vector<1x8x8xf32> to vector<2x8x8xf32>
    %71 = arith.addf %68, %70 : vector<2x8x8xf32>
    %cst_16 = arith.constant dense<0xFF800000> : vector<2x8xf32>
    %72 = vector.multi_reduction <maximumf>, %71, %cst_16 [2] : vector<2x8x8xf32> to vector<2x8xf32>
    %73 = vector.shape_cast %72 : vector<2x8xf32> to vector<2x8x1xf32>
    %74 = vector.broadcast %73 : vector<2x8x1xf32> to vector<2x8x8xf32>
    %75 = arith.subf %71, %74 : vector<2x8x8xf32>
    %76 = math.exp %75 : vector<2x8x8xf32>
    %cst_17 = arith.constant dense<0.000000e+00> : vector<2x8xf32>
    %77 = vector.multi_reduction <add>, %76, %cst_17 [2] : vector<2x8x8xf32> to vector<2x8xf32>
    %78 = vector.shape_cast %77 : vector<2x8xf32> to vector<2x8x1xf32>
    %79 = tpu.reciprocal %78 {approx = true} : vector<2x8x1xf32> -> vector<2x8x1xf32>
    %80 = vector.broadcast %79 : vector<2x8x1xf32> to vector<2x8x8xf32>
    %81 = arith.mulf %76, %80 : vector<2x8x8xf32>
    %82 = arith.truncf %81 : vector<2x8x8xf32> to vector<2x8x8xbf16>
    "tpu.trace_start"() <{level = 10 : i32, message = "bts,bsd->btd"}> : () -> ()
    %cst_18 = arith.constant dense<0.000000e+00> : vector<2x8x8xf32>
    %83 = tpu.matmul %82, %67, %cst_18 {dimension_numbers = #tpu.dot_dimension_numbers<[2], [1], [1], [2], [0, 0, 0, 1, 1, 2], [0], [0]>} : vector<2x8x8xbf16>, vector<2x8x8xbf16>, vector<2x8x8xf32> -> vector<2x8x8xf32>
    "tpu.trace_stop"() : () -> ()
    %84 = vector.shape_cast %83 : vector<2x8x8xf32> to vector<16x8xf32>
    %85 = vector.extract_strided_slice %5 {offsets = [0, 24], sizes = [16, 8], strides = [1, 1]} : vector<16x96xf32> to vector<16x8xf32>
    %86 = vector.extract_strided_slice %5 {offsets = [0, 56], sizes = [16, 8], strides = [1, 1]} : vector<16x96xf32> to vector<16x8xf32>
    %87 = vector.extract_strided_slice %5 {offsets = [0, 88], sizes = [16, 8], strides = [1, 1]} : vector<16x96xf32> to vector<16x8xf32>
    %88 = vector.shape_cast %85 : vector<16x8xf32> to vector<2x8x8xf32>
    %89 = arith.truncf %88 : vector<2x8x8xf32> to vector<2x8x8xbf16>
    %90 = vector.shape_cast %86 : vector<16x8xf32> to vector<2x8x8xf32>
    %91 = arith.truncf %90 : vector<2x8x8xf32> to vector<2x8x8xbf16>
    %92 = vector.shape_cast %87 : vector<16x8xf32> to vector<2x8x8xf32>
    %93 = arith.truncf %92 : vector<2x8x8xf32> to vector<2x8x8xbf16>
    "tpu.trace_start"() <{level = 10 : i32, message = "btd,bsd->bts"}> : () -> ()
    %cst_19 = arith.constant dense<0.000000e+00> : vector<2x8x8xf32>
    %94 = tpu.matmul %89, %91, %cst_19 {dimension_numbers = #tpu.dot_dimension_numbers<[2], [2], [1], [1], [0, 0, 0, 1, 1, 1], [0], [0]>} : vector<2x8x8xbf16>, vector<2x8x8xbf16>, vector<2x8x8xf32> -> vector<2x8x8xf32>
    "tpu.trace_stop"() : () -> ()
    %95 = vector.shape_cast %6 : vector<8x8xf32> to vector<1x8x8xf32>
    %96 = vector.broadcast %95 : vector<1x8x8xf32> to vector<2x8x8xf32>
    %97 = arith.addf %94, %96 : vector<2x8x8xf32>
    %cst_20 = arith.constant dense<0xFF800000> : vector<2x8xf32>
    %98 = vector.multi_reduction <maximumf>, %97, %cst_20 [2] : vector<2x8x8xf32> to vector<2x8xf32>
    %99 = vector.shape_cast %98 : vector<2x8xf32> to vector<2x8x1xf32>
    %100 = vector.broadcast %99 : vector<2x8x1xf32> to vector<2x8x8xf32>
    %101 = arith.subf %97, %100 : vector<2x8x8xf32>
    %102 = math.exp %101 : vector<2x8x8xf32>
    %cst_21 = arith.constant dense<0.000000e+00> : vector<2x8xf32>
    %103 = vector.multi_reduction <add>, %102, %cst_21 [2] : vector<2x8x8xf32> to vector<2x8xf32>
    %104 = vector.shape_cast %103 : vector<2x8xf32> to vector<2x8x1xf32>
    %105 = tpu.reciprocal %104 {approx = true} : vector<2x8x1xf32> -> vector<2x8x1xf32>
    %106 = vector.broadcast %105 : vector<2x8x1xf32> to vector<2x8x8xf32>
    %107 = arith.mulf %102, %106 : vector<2x8x8xf32>
    %108 = arith.truncf %107 : vector<2x8x8xf32> to vector<2x8x8xbf16>
    "tpu.trace_start"() <{level = 10 : i32, message = "bts,bsd->btd"}> : () -> ()
    %cst_22 = arith.constant dense<0.000000e+00> : vector<2x8x8xf32>
    %109 = tpu.matmul %108, %93, %cst_22 {dimension_numbers = #tpu.dot_dimension_numbers<[2], [1], [1], [2], [0, 0, 0, 1, 1, 2], [0], [0]>} : vector<2x8x8xbf16>, vector<2x8x8xbf16>, vector<2x8x8xf32> -> vector<2x8x8xf32>
    "tpu.trace_stop"() : () -> ()
    %110 = vector.shape_cast %109 : vector<2x8x8xf32> to vector<16x8xf32>
    %111 = tpu.concatenate %32, %58, %84, %110 in 1 : vector<16x8xf32>, vector<16x8xf32>, vector<16x8xf32>, vector<16x8xf32> -> vector<16x32xf32>
    %112 = arith.truncf %111 : vector<16x32xf32> to vector<16x32xbf16>
    %c0_23 = arith.constant 0 : index
    %c0_24 = arith.constant 0 : index
    %113 = vector.load %arg4[%c0_23, %c0_24] : memref<32x32xbf16, #tpu.memory_space<vmem>>, vector<32x32xbf16>
    %cst_25 = arith.constant dense<0.000000e+00> : vector<16x32xf32>
    %114 = tpu.matmul %112, %113, %cst_25 {dimension_numbers = #tpu.dot_dimension_numbers<[1], [0], [0], [1], [0, 0, 1, 1], [], []>} : vector<16x32xbf16>, vector<32x32xbf16>, vector<16x32xf32> -> vector<16x32xf32>
    %c0_26 = arith.constant 0 : index
    %c0_27 = arith.constant 0 : index
    %115 = vector.load %arg5[%c0_26, %c0_27] : memref<1x32xf32, #tpu.memory_space<vmem>>, vector<1x32xf32>
    %116 = vector.broadcast %115 : vector<1x32xf32> to vector<16x32xf32>
    %117 = arith.addf %114, %116 : vector<16x32xf32>
    %118 = vector.extract_strided_slice %117 {offsets = [0, 0], sizes = [1, 32], strides = [1, 1]} : vector<16x32xf32> to vector<1x32xf32>
    %c0_28 = arith.constant 0 : index
    %c0_29 = arith.constant 0 : index
    %119 = vector.load %arg7[%c0_28, %c0_29] : memref<2x256xf32, #tpu.memory_space<vmem>>, vector<1x32xf32>
    tpu.vector_store %arg7[%c0_28, %c0_29], %118 {strides = array<i32>} : memref<2x256xf32, #tpu.memory_space<vmem>>, vector<1x32xf32>,
    %120 = vector.extract_strided_slice %117 {offsets = [1, 0], sizes = [1, 32], strides = [1, 1]} : vector<16x32xf32> to vector<1x32xf32>
    %c0_30 = arith.constant 0 : index
    %c32 = arith.constant 32 : index
    %121 = vector.load %arg7[%c0_30, %c32] : memref<2x256xf32, #tpu.memory_space<vmem>>, vector<1x32xf32>
    tpu.vector_store %arg7[%c0_30, %c32], %120 {strides = array<i32>} : memref<2x256xf32, #tpu.memory_space<vmem>>, vector<1x32xf32>,
    %122 = vector.extract_strided_slice %117 {offsets = [2, 0], sizes = [1, 32], strides = [1, 1]} : vector<16x32xf32> to vector<1x32xf32>
    %c0_31 = arith.constant 0 : index
    %c64 = arith.constant 64 : index
    %123 = vector.load %arg7[%c0_31, %c64] : memref<2x256xf32, #tpu.memory_space<vmem>>, vector<1x32xf32>
    tpu.vector_store %arg7[%c0_31, %c64], %122 {strides = array<i32>} : memref<2x256xf32, #tpu.memory_space<vmem>>, vector<1x32xf32>,
    %124 = vector.extract_strided_slice %117 {offsets = [3, 0], sizes = [1, 32], strides = [1, 1]} : vector<16x32xf32> to vector<1x32xf32>
    %c0_32 = arith.constant 0 : index
    %c96 = arith.constant 96 : index
    %125 = vector.load %arg7[%c0_32, %c96] : memref<2x256xf32, #tpu.memory_space<vmem>>, vector<1x32xf32>
    tpu.vector_store %arg7[%c0_32, %c96], %124 {strides = array<i32>} : memref<2x256xf32, #tpu.memory_space<vmem>>, vector<1x32xf32>,
    %126 = vector.extract_strided_slice %117 {offsets = [4, 0], sizes = [1, 32], strides = [1, 1]} : vector<16x32xf32> to vector<1x32xf32>
    %c0_33 = arith.constant 0 : index
    %c128 = arith.constant 128 : index
    %127 = vector.load %arg7[%c0_33, %c128] : memref<2x256xf32, #tpu.memory_space<vmem>>, vector<1x32xf32>
    tpu.vector_store %arg7[%c0_33, %c128], %126 {strides = array<i32>} : memref<2x256xf32, #tpu.memory_space<vmem>>, vector<1x32xf32>,
    %128 = vector.extract_strided_slice %117 {offsets = [5, 0], sizes = [1, 32], strides = [1, 1]} : vector<16x32xf32> to vector<1x32xf32>
    %c0_34 = arith.constant 0 : index
    %c160 = arith.constant 160 : index
    %129 = vector.load %arg7[%c0_34, %c160] : memref<2x256xf32, #tpu.memory_space<vmem>>, vector<1x32xf32>
    tpu.vector_store %arg7[%c0_34, %c160], %128 {strides = array<i32>} : memref<2x256xf32, #tpu.memory_space<vmem>>, vector<1x32xf32>,
    %130 = vector.extract_strided_slice %117 {offsets = [6, 0], sizes = [1, 32], strides = [1, 1]} : vector<16x32xf32> to vector<1x32xf32>
    %c0_35 = arith.constant 0 : index
    %c192 = arith.constant 192 : index
    %131 = vector.load %arg7[%c0_35, %c192] : memref<2x256xf32, #tpu.memory_space<vmem>>, vector<1x32xf32>
    tpu.vector_store %arg7[%c0_35, %c192], %130 {strides = array<i32>} : memref<2x256xf32, #tpu.memory_space<vmem>>, vector<1x32xf32>,
    %132 = vector.extract_strided_slice %117 {offsets = [7, 0], sizes = [1, 32], strides = [1, 1]} : vector<16x32xf32> to vector<1x32xf32>
    %c0_36 = arith.constant 0 : index
    %c224 = arith.constant 224 : index
    %133 = vector.load %arg7[%c0_36, %c224] : memref<2x256xf32, #tpu.memory_space<vmem>>, vector<1x32xf32>
    tpu.vector_store %arg7[%c0_36, %c224], %132 {strides = array<i32>} : memref<2x256xf32, #tpu.memory_space<vmem>>, vector<1x32xf32>,
    %134 = vector.extract_strided_slice %117 {offsets = [8, 0], sizes = [1, 32], strides = [1, 1]} : vector<16x32xf32> to vector<1x32xf32>
    %c1 = arith.constant 1 : index
    %c0_37 = arith.constant 0 : index
    %135 = vector.load %arg7[%c1, %c0_37] : memref<2x256xf32, #tpu.memory_space<vmem>>, vector<1x32xf32>
    tpu.vector_store %arg7[%c1, %c0_37], %134 {strides = array<i32>} : memref<2x256xf32, #tpu.memory_space<vmem>>, vector<1x32xf32>,
    %136 = vector.extract_strided_slice %117 {offsets = [9, 0], sizes = [1, 32], strides = [1, 1]} : vector<16x32xf32> to vector<1x32xf32>
    %c1_38 = arith.constant 1 : index
    %c32_39 = arith.constant 32 : index
    %137 = vector.load %arg7[%c1_38, %c32_39] : memref<2x256xf32, #tpu.memory_space<vmem>>, vector<1x32xf32>
    tpu.vector_store %arg7[%c1_38, %c32_39], %136 {strides = array<i32>} : memref<2x256xf32, #tpu.memory_space<vmem>>, vector<1x32xf32>,
    %138 = vector.extract_strided_slice %117 {offsets = [10, 0], sizes = [1, 32], strides = [1, 1]} : vector<16x32xf32> to vector<1x32xf32>
    %c1_40 = arith.constant 1 : index
    %c64_41 = arith.constant 64 : index
    %139 = vector.load %arg7[%c1_40, %c64_41] : memref<2x256xf32, #tpu.memory_space<vmem>>, vector<1x32xf32>
    tpu.vector_store %arg7[%c1_40, %c64_41], %138 {strides = array<i32>} : memref<2x256xf32, #tpu.memory_space<vmem>>, vector<1x32xf32>,
    %140 = vector.extract_strided_slice %117 {offsets = [11, 0], sizes = [1, 32], strides = [1, 1]} : vector<16x32xf32> to vector<1x32xf32>
    %c1_42 = arith.constant 1 : index
    %c96_43 = arith.constant 96 : index
    %141 = vector.load %arg7[%c1_42, %c96_43] : memref<2x256xf32, #tpu.memory_space<vmem>>, vector<1x32xf32>
    tpu.vector_store %arg7[%c1_42, %c96_43], %140 {strides = array<i32>} : memref<2x256xf32, #tpu.memory_space<vmem>>, vector<1x32xf32>,
    %142 = vector.extract_strided_slice %117 {offsets = [12, 0], sizes = [1, 32], strides = [1, 1]} : vector<16x32xf32> to vector<1x32xf32>
    %c1_44 = arith.constant 1 : index
    %c128_45 = arith.constant 128 : index
    %143 = vector.load %arg7[%c1_44, %c128_45] : memref<2x256xf32, #tpu.memory_space<vmem>>, vector<1x32xf32>
    tpu.vector_store %arg7[%c1_44, %c128_45], %142 {strides = array<i32>} : memref<2x256xf32, #tpu.memory_space<vmem>>, vector<1x32xf32>,
    %144 = vector.extract_strided_slice %117 {offsets = [13, 0], sizes = [1, 32], strides = [1, 1]} : vector<16x32xf32> to vector<1x32xf32>
    %c1_46 = arith.constant 1 : index
    %c160_47 = arith.constant 160 : index
    %145 = vector.load %arg7[%c1_46, %c160_47] : memref<2x256xf32, #tpu.memory_space<vmem>>, vector<1x32xf32>
    tpu.vector_store %arg7[%c1_46, %c160_47], %144 {strides = array<i32>} : memref<2x256xf32, #tpu.memory_space<vmem>>, vector<1x32xf32>,
    %146 = vector.extract_strided_slice %117 {offsets = [14, 0], sizes = [1, 32], strides = [1, 1]} : vector<16x32xf32> to vector<1x32xf32>
    %c1_48 = arith.constant 1 : index
    %c192_49 = arith.constant 192 : index
    %147 = vector.load %arg7[%c1_48, %c192_49] : memref<2x256xf32, #tpu.memory_space<vmem>>, vector<1x32xf32>
    tpu.vector_store %arg7[%c1_48, %c192_49], %146 {strides = array<i32>} : memref<2x256xf32, #tpu.memory_space<vmem>>, vector<1x32xf32>,
    %148 = vector.extract_strided_slice %117 {offsets = [15, 0], sizes = [1, 32], strides = [1, 1]} : vector<16x32xf32> to vector<1x32xf32>
    %c1_50 = arith.constant 1 : index
    %c224_51 = arith.constant 224 : index
    %149 = vector.load %arg7[%c1_50, %c224_51] : memref<2x256xf32, #tpu.memory_space<vmem>>, vector<1x32xf32>
    tpu.vector_store %arg7[%c1_50, %c224_51], %148 {strides = array<i32>} : memref<2x256xf32, #tpu.memory_space<vmem>>, vector<1x32xf32>,
    return
  }
  func.func @transform_0(%arg0: i32) -> (i32, i32) {
    %c0_i32 = arith.constant 0 : i32
    %c0_i32_0 = arith.constant 0 : i32
    %c0_i32_1 = arith.constant 0 : i32
    return %c0_i32, %c0_i32_0 : i32, i32
  }
  func.func @transform_1(%arg0: i32) -> (i32, i32) {
    %c0_i32 = arith.constant 0 : i32
    %c0_i32_0 = arith.constant 0 : i32
    %c0_i32_1 = arith.constant 0 : i32
    return %c0_i32, %c0_i32_0 : i32, i32
  }
  func.func @transform_2(%arg0: i32) -> (i32, i32) {
    %c0_i32 = arith.constant 0 : i32
    %c0_i32_0 = arith.constant 0 : i32
    %c0_i32_1 = arith.constant 0 : i32
    return %c0_i32, %c0_i32_0 : i32, i32
  }
  func.func @transform_3(%arg0: i32) -> (i32, i32) {
    %c0_i32 = arith.constant 0 : i32
    %c0_i32_0 = arith.constant 0 : i32
    %c0_i32_1 = arith.constant 0 : i32
    return %c0_i32, %c0_i32_0 : i32, i32
  }
  func.func @transform_4(%arg0: i32) -> (i32, i32) {
    %c0_i32 = arith.constant 0 : i32
    %c0_i32_0 = arith.constant 0 : i32
    %c0_i32_1 = arith.constant 0 : i32
    return %c0_i32, %c0_i32_0 : i32, i32
  }
  func.func @transform_5(%arg0: i32) -> (i32, i32) {
    %c0_i32 = arith.constant 0 : i32
    %c0_i32_0 = arith.constant 0 : i32
    %c0_i32_1 = arith.constant 0 : i32
    return %c0_i32, %c0_i32_0 : i32, i32
  }
  func.func @transform_6(%arg0: i32) -> (i32, i32) {
    %c0_i32 = arith.constant 0 : i32
    %c0_i32_0 = arith.constant 0 : i32
    %c0_i32_1 = arith.constant 0 : i32
    return %c0_i32, %c0_i32_0 : i32, i32
  }
}

</mosaic_0001>

<llo_original>
// kernel: tpu_custom_call.1
$region0: #{tpu_custom_call.1}
  #allocation0 [shape = 'u32[]', space=smem, size = 0x4, offset = 0x4, fixed_abs, tag = 'smem constant byte address 0x4 - core index']
  #allocation1 [shape = 'u32[144,128]{1,0:T(1,128)}', space=vmem, size = 0x12000, scoped, tag = 'internal scratch']
  %s0 = inlined_call_operand.hbm [shape: bf16[16,32], index: 0, kind: input, shape index: {}]
  %s1 = inlined_call_operand.hbm [shape: bf16[32,96], index: 1, kind: input, shape index: {}]
  %s2 = inlined_call_operand.vmem [shape: f32[1,96], index: 2, kind: input, shape index: {}]
  %s3 = inlined_call_operand.hbm [shape: bf16[32,32], index: 3, kind: input, shape index: {}]
  %s4 = inlined_call_operand.vmem [shape: f32[1,32], index: 4, kind: input, shape index: {}]
  %s5 = inlined_call_operand.vmem [shape: f32[8,8], index: 5, kind: input, shape index: {}]
  %s6 = inlined_call_operand.hbm [shape: f32[2,256], index: 6, kind: output, shape index: {}]
  %s7 = sld [smem:[#allocation0]]
  $region46: #{tpu_custom_call.1} parent=0
    _
  %s9 = ssub.s32 1, %s7
  %s10 = scalar_select 0, %s9, %s7
  $region1: #{tpu_custom_call.1} parent=0
    #allocation2 [shape = 'u8[4096]{0}', space=vmem, size = 0x1000, scoped, tag = 'input window, operand 0, single buffered']
    #allocation3 [shape = 's32[1]{0}', space=sflag, size = 0x4, scoped, tag = 'scoped memory for tpu_custom_call.1']
    #allocation4 [shape = 's32[1]{0}', space=sflag, size = 0x4, scoped, tag = 'scoped memory for tpu_custom_call.1']
    #allocation5 [shape = 'u8[8192]{0}', space=vmem, size = 0x2000, scoped, tag = 'input window, operand 1, single buffered']
    #allocation6 [shape = 's32[1]{0}', space=sflag, size = 0x4, scoped, tag = 'scoped memory for tpu_custom_call.1']
    #allocation7 [shape = 'u8[8192]{0}', space=vmem, size = 0x2000, scoped, tag = 'input window, operand 3, single buffered']
    #allocation8 [shape = 'u8[2048]{0}', space=vmem, size = 0x800, scoped, tag = 'output window, operand 0, single buffered']
    %11 = vsyncpa [#allocation3], 0
    %12 = vsyncpa [#allocation6], 0
    %13 = vsyncpa [#allocation4], 0
    // Predicated region
    $region2: #{tpu_custom_call.1} parent=1 // pred_check
      _
    $region3: #{tpu_custom_call.1} parent=1 // pred_check_branch
      %15 = sbr.rel (0) target = $region5
    $region4: #{tpu_custom_call.1} parent=1 // pred_region
      %s17 = ssub.s32 128, 128
      %18 = vsyncadd [#allocation3], %s17
      %s19 = sshll.u32 [#allocation2], 4
      %s20 = int_to_ptr.vmem [resolvable:$true] %s19
      %25 = dma.hbm_to_vmem [thread:$0]  %s0, 128, %s20, [#allocation3], 64, 64, 4
    $region5: #{tpu_custom_call.1} parent=1 // pred_fallthru
      _
    // Predicated region
    $region6: #{tpu_custom_call.1} parent=1 // pred_check
      _
    $region7: #{tpu_custom_call.1} parent=1 // pred_check_branch
      %27 = sbr.rel (0) target = $region9
    $region8: #{tpu_custom_call.1} parent=1 // pred_region
      %s29 = ssub.s32 256, 256
      %30 = vsyncadd [#allocation6], %s29
      %s31 = sshll.u32 [#allocation5], 4
      %s32 = int_to_ptr.vmem [resolvable:$true] %s31
      %37 = dma.hbm_to_vmem [thread:$0]  %s1, 256, %s32, [#allocation6], 64, 64, 4
    $region9: #{tpu_custom_call.1} parent=1 // pred_fallthru
      _
    // Predicated region
    $region10: #{tpu_custom_call.1} parent=1 // pred_check
      _
    $region11: #{tpu_custom_call.1} parent=1 // pred_check_branch
      %39 = sbr.rel (0) target = $region13
    $region12: #{tpu_custom_call.1} parent=1 // pred_region
      _
    $region13: #{tpu_custom_call.1} parent=1 // pred_fallthru
      _
    // Predicated region
    $region14: #{tpu_custom_call.1} parent=1 // pred_check
      _
    $region15: #{tpu_custom_call.1} parent=1 // pred_check_branch
      %41 = sbr.rel (0) target = $region17
    $region16: #{tpu_custom_call.1} parent=1 // pred_region
      %s43 = ssub.s32 256, 256
      %44 = vsyncadd [#allocation6], %s43
      %s45 = sshll.u32 [#allocation7], 4
      %s46 = int_to_ptr.vmem [resolvable:$true] %s45
      %51 = dma.hbm_to_vmem [thread:$0]  %s3, 256, %s46, [#allocation6], 64, 64, 4
    $region17: #{tpu_custom_call.1} parent=1 // pred_fallthru
      _
    // Predicated region
    $region18: #{tpu_custom_call.1} parent=1 // pred_check
      _
    $region19: #{tpu_custom_call.1} parent=1 // pred_check_branch
      %53 = sbr.rel (0) target = $region21
    $region20: #{tpu_custom_call.1} parent=1 // pred_region
      _
    $region21: #{tpu_custom_call.1} parent=1 // pred_fallthru
      _
    // Predicated region
    $region22: #{tpu_custom_call.1} parent=1 // pred_check
      _
    $region23: #{tpu_custom_call.1} parent=1 // pred_check_branch
      %55 = sbr.rel (0) target = $region25
    $region24: #{tpu_custom_call.1} parent=1 // pred_region
      _
    $region25: #{tpu_custom_call.1} parent=1 // pred_fallthru
      _
    // Predicated region
    $region26: #{tpu_custom_call.1} parent=1 // pred_check
      _
    $region27: #{tpu_custom_call.1} parent=1 // pred_check_branch
      %57 = sbr.rel (0) target = $region29
    $region28: #{tpu_custom_call.1} parent=1 // pred_region
      %58 = dma.done [#allocation3], 128
    $region29: #{tpu_custom_call.1} parent=1 // pred_fallthru
      _
    // Predicated region
    $region30: #{tpu_custom_call.1} parent=1 // pred_check
      _
    $region31: #{tpu_custom_call.1} parent=1 // pred_check_branch
      %60 = sbr.rel (0) target = $region33
    $region32: #{tpu_custom_call.1} parent=1 // pred_region
      %61 = dma.done [#allocation6], 256
    $region33: #{tpu_custom_call.1} parent=1 // pred_fallthru
      _
    // Predicated region
    $region34: #{tpu_custom_call.1} parent=1 // pred_check
      _
    $region35: #{tpu_custom_call.1} parent=1 // pred_check_branch
      %63 = sbr.rel (0) target = $region37
    $region36: #{tpu_custom_call.1} parent=1 // pred_region
      %64 = dma.done [#allocation6], 256
    $region37: #{tpu_custom_call.1} parent=1 // pred_fallthru
      _
    %v66 = vld [vmem:[#allocation2] sm:$0xf]
    %v67 = vld [vmem:[#allocation2 + $0x4] sm:$0xf]
    %v68 = vld [vmem:[#allocation5] sm:$0xf]
    %v69 = vld [vmem:[#allocation5 + $0x4] sm:$0xf]
    %v70 = vld [vmem:[#allocation5 + $0x8] sm:$0xf]
    %v71 = vld [vmem:[#allocation5 + $0xc] sm:$0xf]
    %v72 = vld [vmem:[%s2] sm:$0x1]
    %v74 = vlaneseq
    %v75 = vshrl.u32 %v74, 7
    %v76 = vsub.s32 0, %v75
    %v77 = vrot.slane %v72, %v76
    %v81 = vunpack.c.l.b16 %v66
    %v82 = vunpack.c.l.b16 %v67
    %v83 = vpack.c.b16 %v82, %v81
    %v88 = vunpack.c.l.b16 %v68
    %v89 = vunpack.c.l.b16 %v69
    %v90 = vunpack.c.l.b16 %v70
    %v91 = vunpack.c.l.b16 %v71
    %v92 = vpack.c.b16 %v89, %v88
    %v93 = vpack.c.b16 %v91, %v90
    %vm96 = vcmask 261120
    %v98 = vsel %vm96, %v83, 0
    %100 = vmatprep.subr.bf16.mxu0 0
    %101 = vmatpush1.bf16.msra.mxu0 %v92
    %102 = vmatprep.subr.bf16.mxu0 0
    %103 = vmatpush1.bf16.msra.mxu0 %v93
    %104 = vmatprep.subr.bf16.mxu0 0
    %105 = vmatpush1.bf16.msra.mxu0 0
    %106 = vmatprep.subr.bf16.mxu0 0
    %107 = vmatpush1.bf16.msra.mxu0 0
    %108 = vmatprep.subr.bf16.mxu0 0
    %109 = vmatpush1.bf16.msra.mxu0 0
    %110 = vmatprep.subr.bf16.mxu0 0
    %111 = vmatpush1.bf16.msra.mxu0 0
    %112 = vmatprep.subr.bf16.mxu0 0
    %113 = vmatpush1.bf16.msra.mxu0 0
    %114 = vmatprep.subr.bf16.mxu0 0
    %115 = vmatpush1.bf16.msra.mxu0 0
    %116 = vmatprep.subr.bf16.mxu0 0
    %117 = vmatpush1.bf16.msra.mxu0 0
    %118 = vmatprep.subr.bf16.mxu0 0
    %119 = vmatpush1.bf16.msra.mxu0 0
    %120 = vmatprep.subr.bf16.mxu0 0
    %121 = vmatpush1.bf16.msra.mxu0 0
    %122 = vmatprep.subr.bf16.mxu0 0
    %123 = vmatpush1.bf16.msra.mxu0 0
    %124 = vmatprep.subr.bf16.mxu0 0
    %125 = vmatpush1.bf16.msra.mxu0 0
    %126 = vmatprep.subr.bf16.mxu0 0
    %127 = vmatpush1.bf16.msra.mxu0 0
    %128 = vmatprep.subr.bf16.mxu0 0
    %129 = vmatpush1.bf16.msra.mxu0 0
    %130 = vmatprep.subr.bf16.mxu0 0
    %131 = vmatpush1.bf16.msra.mxu0 0
    %132 = vmatprep.mubr.bf16.mxu0 0
    %133 = vmatmul.mubr.bf16.gmra.mrb[0].mxu0 %v98
    %v134 = vpop.f32.mrb[0].mxu0
    %v135 = vadd.f32 %v77, %v134
    %v136 = vpop.f32.mrb[0].mxu0
    %v137 = vpop.f32.mrb[0].mxu0
    %v138 = vadd.f32 %v77, %v137
    %v139 = vpop.f32.mrb[0].mxu0
    %140 = vdwg.mxu0
    %v141 = vld [vmem:[%s5] sm:$0xff]
    %v142 = vpack.c.bf16 %v135, %v135
    %v143 = vpack.c.bf16 %v138, %v138
    %145 = vrot.lane.b32.xlu0 %v142, 96
    %v146 = vpop.permute.xlu0 %145
    %vm147 = vcmask 64512
    %v149 = vsel %vm147, %v142, 0
    %v152 = vsel %vm147, %v146, 0
    %154 = vmatprep.subr.bf16.mxu0 0
    %155 = vmatpush1.bf16.xpose.msra.mxu0 %v152
    %156 = vmatprep.subr.bf16.mxu0 0
    %157 = vmatpush1.bf16.xpose.msra.mxu0 0
    %158 = vmatprep.subr.bf16.mxu0 0
    %159 = vmatpush1.bf16.xpose.msra.mxu0 0
    %160 = vmatprep.subr.bf16.mxu0 0
    %161 = vmatpush1.bf16.xpose.msra.mxu0 0
    %162 = vmatprep.subr.bf16.mxu0 0
    %163 = vmatpush1.bf16.xpose.msra.mxu0 0
    %164 = vmatprep.subr.bf16.mxu0 0
    %165 = vmatpush1.bf16.xpose.msra.mxu0 0
    %166 = vmatprep.subr.bf16.mxu0 0
    %167 = vmatpush1.bf16.xpose.msra.mxu0 0
    %168 = vmatprep.subr.bf16.mxu0 0
    %169 = vmatpush1.bf16.xpose.msra.mxu0 0
    %170 = vmatprep.subr.bf16.mxu0 0
    %171 = vmatpush1.bf16.xpose.msra.mxu0 0
    %172 = vmatprep.subr.bf16.mxu0 0
    %173 = vmatpush1.bf16.xpose.msra.mxu0 0
    %174 = vmatprep.subr.bf16.mxu0 0
    %175 = vmatpush1.bf16.xpose.msra.mxu0 0
    %176 = vmatprep.subr.bf16.mxu0 0
    %177 = vmatpush1.bf16.xpose.msra.mxu0 0
    %178 = vmatprep.subr.bf16.mxu0 0
    %179 = vmatpush1.bf16.xpose.msra.mxu0 0
    %180 = vmatprep.subr.bf16.mxu0 0
    %181 = vmatpush1.bf16.xpose.msra.mxu0 0
    %182 = vmatprep.subr.bf16.mxu0 0
    %183 = vmatpush1.bf16.xpose.msra.mxu0 0
    %184 = vmatprep.subr.bf16.mxu0 0
    %185 = vmatpush1.bf16.xpose.msra.mxu0 0
    %186 = vmatprep.mubr.bf16.mxu0 0
    %187 = vmatmul.mubr.bf16.gmra.mrb[0].mxu0 %v149
    %v188 = vpop.f32.mrb[0].mxu0
    %v189 = vadd.f32 %v141, %v188
    %v190 = vpop.f32.mrb[0].mxu0
    %v191 = vpop.f32.mrb[0].mxu0
    %v192 = vpop.f32.mrb[0].mxu0
    %193 = vdwg.mxu0
    %195 = vrot.lane.b32.xlu0 %v143, 96
    %v196 = vpop.permute.xlu0 %195
    %v198 = vsel %vm147, %v143, 0
    %v201 = vsel %vm147, %v196, 0
    %203 = vmatprep.subr.bf16.mxu0 0
    %204 = vmatpush1.bf16.xpose.msra.mxu0 %v201
    %205 = vmatprep.subr.bf16.mxu0 0
    %206 = vmatpush1.bf16.xpose.msra.mxu0 0
    %207 = vmatprep.subr.bf16.mxu0 0
    %208 = vmatpush1.bf16.xpose.msra.mxu0 0
    %209 = vmatprep.subr.bf16.mxu0 0
    %210 = vmatpush1.bf16.xpose.msra.mxu0 0
    %211 = vmatprep.subr.bf16.mxu0 0
    %212 = vmatpush1.bf16.xpose.msra.mxu0 0
    %213 = vmatprep.subr.bf16.mxu0 0
    %214 = vmatpush1.bf16.xpose.msra.mxu0 0
    %215 = vmatprep.subr.bf16.mxu0 0
    %216 = vmatpush1.bf16.xpose.msra.mxu0 0
    %217 = vmatprep.subr.bf16.mxu0 0
    %218 = vmatpush1.bf16.xpose.msra.mxu0 0
    %219 = vmatprep.subr.bf16.mxu0 0
    %220 = vmatpush1.bf16.xpose.msra.mxu0 0
    %221 = vmatprep.subr.bf16.mxu0 0
    %222 = vmatpush1.bf16.xpose.msra.mxu0 0
    %223 = vmatprep.subr.bf16.mxu0 0
    %224 = vmatpush1.bf16.xpose.msra.mxu0 0
    %225 = vmatprep.subr.bf16.mxu0 0
    %226 = vmatpush1.bf16.xpose.msra.mxu0 0
    %227 = vmatprep.subr.bf16.mxu0 0
    %228 = vmatpush1.bf16.xpose.msra.mxu0 0
    %229 = vmatprep.subr.bf16.mxu0 0
    %230 = vmatpush1.bf16.xpose.msra.mxu0 0
    %231 = vmatprep.subr.bf16.mxu0 0
    %232 = vmatpush1.bf16.xpose.msra.mxu0 0
    %233 = vmatprep.subr.bf16.mxu0 0
    %234 = vmatpush1.bf16.xpose.msra.mxu0 0
    %235 = vmatprep.mubr.bf16.mxu0 0
    %236 = vmatmul.mubr.bf16.gmra.mrb[0].mxu0 %v198
    %v237 = vpop.f32.mrb[0].mxu0
    %v238 = vadd.f32 %v141, %v237
    %v239 = vpop.f32.mrb[0].mxu0
    %v240 = vpop.f32.mrb[0].mxu0
    %v241 = vpop.f32.mrb[0].mxu0
    %242 = vdwg.mxu0
    %v243 = vsel %vm147, %v189, -inf
    %244 = vmax.xlane.f32.xlu0 %v243
    %v245 = vpop.xlane.xlu0 %244
    %v246 = vsel %vm147, %v238, -inf
    %247 = vmax.xlane.f32.xlu0 %v246
    %v248 = vpop.xlane.xlu0 %247
    %v249 = vsub.f32 %v189, %v245
    %v250 = vsub.f32 %v238, %v248
    %v251 = vmul.f32 %v249, 1.442695
    %v252 = vpow.pop %v251
    %v253 = vmul.f32 %v250, 1.442695
    %v254 = vpow.pop %v253
    %v255 = vsel %vm147, %v252, 0.0
    %256 = vadd.xlane.f32.xlu0 %v255
    %v257 = vpop.xlane.xlu0 %256
    %v258 = vsel %vm147, %v254, 0.0
    %259 = vadd.xlane.f32.xlu0 %v258
    %v260 = vpop.xlane.xlu0 %259
    %v261 = vrcp.pop %v257
    %v262 = vrcp.pop %v260
    %v263 = vmul.f32 %v252, %v261
    %v264 = vmul.f32 %v254, %v262
    %v265 = vpack.c.bf16 %v263, %v263
    %v266 = vpack.c.bf16 %v264, %v264
    %267 = vrot.lane.b32.xlu0 %v142, 64
    %v268 = vpop.permute.xlu0 %267
    %v270 = vsel %vm147, %v265, 0
    %vm272 = vcmask 1043456
    %v274 = vsel %vm272, %v268, 0
    %276 = vmatprep.subr.bf16.mxu0 0
    %277 = vmatpush1.bf16.msra.mxu0 %v274
    %278 = vmatprep.subr.bf16.mxu0 0
    %279 = vmatpush1.bf16.msra.mxu0 0
    %280 = vmatprep.subr.bf16.mxu0 0
    %281 = vmatpush1.bf16.msra.mxu0 0
    %282 = vmatprep.subr.bf16.mxu0 0
    %283 = vmatpush1.bf16.msra.mxu0 0
    %284 = vmatprep.subr.bf16.mxu0 0
    %285 = vmatpush1.bf16.msra.mxu0 0
    %286 = vmatprep.subr.bf16.mxu0 0
    %287 = vmatpush1.bf16.msra.mxu0 0
    %288 = vmatprep.subr.bf16.mxu0 0
    %289 = vmatpush1.bf16.msra.mxu0 0
    %290 = vmatprep.subr.bf16.mxu0 0
    %291 = vmatpush1.bf16.msra.mxu0 0
    %292 = vmatprep.subr.bf16.mxu0 0
    %293 = vmatpush1.bf16.msra.mxu0 0
    %294 = vmatprep.subr.bf16.mxu0 0
    %295 = vmatpush1.bf16.msra.mxu0 0
    %296 = vmatprep.subr.bf16.mxu0 0
    %297 = vmatpush1.bf16.msra.mxu0 0
    %298 = vmatprep.subr.bf16.mxu0 0
    %299 = vmatpush1.bf16.msra.mxu0 0
    %300 = vmatprep.subr.bf16.mxu0 0
    %301 = vmatpush1.bf16.msra.mxu0 0
    %302 = vmatprep.subr.bf16.mxu0 0
    %303 = vmatpush1.bf16.msra.mxu0 0
    %304 = vmatprep.subr.bf16.mxu0 0
    %305 = vmatpush1.bf16.msra.mxu0 0
    %306 = vmatprep.subr.bf16.mxu0 0
    %307 = vmatpush1.bf16.msra.mxu0 0
    %308 = vmatprep.mubr.bf16.mxu0 0
    %309 = vmatmul.mubr.bf16.gmra.mrb[0].mxu0 %v270
    %v310 = vpop.f32.mrb[0].mxu0
    %v311 = vadd.f32 0.0, %v310
    %v312 = vpop.f32.mrb[0].mxu0
    %v313 = vpop.f32.mrb[0].mxu0
    %v314 = vpop.f32.mrb[0].mxu0
    %315 = vdwg.mxu0
    %316 = vrot.lane.b32.xlu0 %v143, 64
    %v317 = vpop.permute.xlu0 %316
    %v319 = vsel %vm147, %v266, 0
    %v322 = vsel %vm272, %v317, 0
    %324 = vmatprep.subr.bf16.mxu0 0
    %325 = vmatpush1.bf16.msra.mxu0 %v322
    %326 = vmatprep.subr.bf16.mxu0 0
    %327 = vmatpush1.bf16.msra.mxu0 0
    %328 = vmatprep.subr.bf16.mxu0 0
    %329 = vmatpush1.bf16.msra.mxu0 0
    %330 = vmatprep.subr.bf16.mxu0 0
    %331 = vmatpush1.bf16.msra.mxu0 0
    %332 = vmatprep.subr.bf16.mxu0 0
    %333 = vmatpush1.bf16.msra.mxu0 0
    %334 = vmatprep.subr.bf16.mxu0 0
    %335 = vmatpush1.bf16.msra.mxu0 0
    %336 = vmatprep.subr.bf16.mxu0 0
    %337 = vmatpush1.bf16.msra.mxu0 0
    %338 = vmatprep.subr.bf16.mxu0 0
    %339 = vmatpush1.bf16.msra.mxu0 0
    %340 = vmatprep.subr.bf16.mxu0 0
    %341 = vmatpush1.bf16.msra.mxu0 0
    %342 = vmatprep.subr.bf16.mxu0 0
    %343 = vmatpush1.bf16.msra.mxu0 0
    %344 = vmatprep.subr.bf16.mxu0 0
    %345 = vmatpush1.bf16.msra.mxu0 0
    %346 = vmatprep.subr.bf16.mxu0 0
    %347 = vmatpush1.bf16.msra.mxu0 0
    %348 = vmatprep.subr.bf16.mxu0 0
    %349 = vmatpush1.bf16.msra.mxu0 0
    %350 = vmatprep.subr.bf16.mxu0 0
    %351 = vmatpush1.bf16.msra.mxu0 0
    %352 = vmatprep.subr.bf16.mxu0 0
    %353 = vmatpush1.bf16.msra.mxu0 0
    %354 = vmatprep.subr.bf16.mxu0 0
    %355 = vmatpush1.bf16.msra.mxu0 0
    %356 = vmatprep.mubr.bf16.mxu0 0
    %357 = vmatmul.mubr.bf16.gmra.mrb[0].mxu0 %v319
    %v358 = vpop.f32.mrb[0].mxu0
    %v359 = vadd.f32 0.0, %v358
    %v360 = vpop.f32.mrb[0].mxu0
    %v361 = vpop.f32.mrb[0].mxu0
    %v362 = vpop.f32.mrb[0].mxu0
    %363 = vdwg.mxu0
    %364 = vrot.lane.b32.xlu0 %v142, 120
    %v365 = vpop.permute.xlu0 %364
    %366 = vrot.lane.b32.xlu0 %v142, 88
    %v367 = vpop.permute.xlu0 %366
    %v369 = vsel %vm147, %v365, 0
    %v372 = vsel %vm147, %v367, 0
    %374 = vmatprep.subr.bf16.mxu0 0
    %375 = vmatpush1.bf16.xpose.msra.mxu0 %v372
    %376 = vmatprep.subr.bf16.mxu0 0
    %377 = vmatpush1.bf16.xpose.msra.mxu0 0
    %378 = vmatprep.subr.bf16.mxu0 0
    %379 = vmatpush1.bf16.xpose.msra.mxu0 0
    %380 = vmatprep.subr.bf16.mxu0 0
    %381 = vmatpush1.bf16.xpose.msra.mxu0 0
    %382 = vmatprep.subr.bf16.mxu0 0
    %383 = vmatpush1.bf16.xpose.msra.mxu0 0
    %384 = vmatprep.subr.bf16.mxu0 0
    %385 = vmatpush1.bf16.xpose.msra.mxu0 0
    %386 = vmatprep.subr.bf16.mxu0 0
    %387 = vmatpush1.bf16.xpose.msra.mxu0 0
    %388 = vmatprep.subr.bf16.mxu0 0
    %389 = vmatpush1.bf16.xpose.msra.mxu0 0
    %390 = vmatprep.subr.bf16.mxu0 0
    %391 = vmatpush1.bf16.xpose.msra.mxu0 0
    %392 = vmatprep.subr.bf16.mxu0 0
    %393 = vmatpush1.bf16.xpose.msra.mxu0 0
    %394 = vmatprep.subr.bf16.mxu0 0
    %395 = vmatpush1.bf16.xpose.msra.mxu0 0
    %396 = vmatprep.subr.bf16.mxu0 0
    %397 = vmatpush1.bf16.xpose.msra.mxu0 0
    %398 = vmatprep.subr.bf16.mxu0 0
    %399 = vmatpush1.bf16.xpose.msra.mxu0 0
    %400 = vmatprep.subr.bf16.mxu0 0
    %401 = vmatpush1.bf16.xpose.msra.mxu0 0
    %402 = vmatprep.subr.bf16.mxu0 0
    %403 = vmatpush1.bf16.xpose.msra.mxu0 0
    %404 = vmatprep.subr.bf16.mxu0 0
    %405 = vmatpush1.bf16.xpose.msra.mxu0 0
    %406 = vmatprep.mubr.bf16.mxu0 0
    %407 = vmatmul.mubr.bf16.gmra.mrb[0].mxu0 %v369
    %v408 = vpop.f32.mrb[0].mxu0
    %v409 = vadd.f32 %v141, %v408
    %v410 = vpop.f32.mrb[0].mxu0
    %v411 = vpop.f32.mrb[0].mxu0
    %v412 = vpop.f32.mrb[0].mxu0
    %413 = vdwg.mxu0
    %414 = vrot.lane.b32.xlu0 %v143, 120
    %v415 = vpop.permute.xlu0 %414
    %416 = vrot.lane.b32.xlu0 %v143, 88
    %v417 = vpop.permute.xlu0 %416
    %v419 = vsel %vm147, %v415, 0
    %v422 = vsel %vm147, %v417, 0
    %424 = vmatprep.subr.bf16.mxu0 0
    %425 = vmatpush1.bf16.xpose.msra.mxu0 %v422
    %426 = vmatprep.subr.bf16.mxu0 0
    %427 = vmatpush1.bf16.xpose.msra.mxu0 0
    %428 = vmatprep.subr.bf16.mxu0 0
    %429 = vmatpush1.bf16.xpose.msra.mxu0 0
    %430 = vmatprep.subr.bf16.mxu0 0
    %431 = vmatpush1.bf16.xpose.msra.mxu0 0
    %432 = vmatprep.subr.bf16.mxu0 0
    %433 = vmatpush1.bf16.xpose.msra.mxu0 0
    %434 = vmatprep.subr.bf16.mxu0 0
    %435 = vmatpush1.bf16.xpose.msra.mxu0 0
    %436 = vmatprep.subr.bf16.mxu0 0
    %437 = vmatpush1.bf16.xpose.msra.mxu0 0
    %438 = vmatprep.subr.bf16.mxu0 0
    %439 = vmatpush1.bf16.xpose.msra.mxu0 0
    %440 = vmatprep.subr.bf16.mxu0 0
    %441 = vmatpush1.bf16.xpose.msra.mxu0 0
    %442 = vmatprep.subr.bf16.mxu0 0
    %443 = vmatpush1.bf16.xpose.msra.mxu0 0
    %444 = vmatprep.subr.bf16.mxu0 0
    %445 = vmatpush1.bf16.xpose.msra.mxu0 0
    %446 = vmatprep.subr.bf16.mxu0 0
    %447 = vmatpush1.bf16.xpose.msra.mxu0 0
    %448 = vmatprep.subr.bf16.mxu0 0
    %449 = vmatpush1.bf16.xpose.msra.mxu0 0
    %450 = vmatprep.subr.bf16.mxu0 0
    %451 = vmatpush1.bf16.xpose.msra.mxu0 0
    %452 = vmatprep.subr.bf16.mxu0 0
    %453 = vmatpush1.bf16.xpose.msra.mxu0 0
    %454 = vmatprep.subr.bf16.mxu0 0
    %455 = vmatpush1.bf16.xpose.msra.mxu0 0
    %456 = vmatprep.mubr.bf16.mxu0 0
    %457 = vmatmul.mubr.bf16.gmra.mrb[0].mxu0 %v419
    %v458 = vpop.f32.mrb[0].mxu0
    %v459 = vadd.f32 %v141, %v458
    %v460 = vpop.f32.mrb[0].mxu0
    %v461 = vpop.f32.mrb[0].mxu0
    %v462 = vpop.f32.mrb[0].mxu0
    %463 = vdwg.mxu0
    %v464 = vsel %vm147, %v409, -inf
    %465 = vmax.xlane.f32.xlu0 %v464
    %v466 = vpop.xlane.xlu0 %465
    %v467 = vsel %vm147, %v459, -inf
    %468 = vmax.xlane.f32.xlu0 %v467
    %v469 = vpop.xlane.xlu0 %468
    %v470 = vsub.f32 %v409, %v466
    %v471 = vsub.f32 %v459, %v469
    %v472 = vmul.f32 %v470, 1.442695
    %v473 = vpow.pop %v472
    %v474 = vmul.f32 %v471, 1.442695
    %v475 = vpow.pop %v474
    %v476 = vsel %vm147, %v473, 0.0
    %477 = vadd.xlane.f32.xlu0 %v476
    %v478 = vpop.xlane.xlu0 %477
    %v479 = vsel %vm147, %v475, 0.0
    %480 = vadd.xlane.f32.xlu0 %v479
    %v481 = vpop.xlane.xlu0 %480
    %v482 = vrcp.pop %v478
    %v483 = vrcp.pop %v481
    %v484 = vmul.f32 %v473, %v482
    %v485 = vmul.f32 %v475, %v483
    %v486 = vpack.c.bf16 %v484, %v484
    %v487 = vpack.c.bf16 %v485, %v485
    %488 = vrot.lane.b32.xlu0 %v142, 56
    %v489 = vpop.permute.xlu0 %488
    %v491 = vsel %vm147, %v486, 0
    %v494 = vsel %vm272, %v489, 0
    %496 = vmatprep.subr.bf16.mxu0 0
    %497 = vmatpush1.bf16.msra.mxu0 %v494
    %498 = vmatprep.subr.bf16.mxu0 0
    %499 = vmatpush1.bf16.msra.mxu0 0
    %500 = vmatprep.subr.bf16.mxu0 0
    %501 = vmatpush1.bf16.msra.mxu0 0
    %502 = vmatprep.subr.bf16.mxu0 0
    %503 = vmatpush1.bf16.msra.mxu0 0
    %504 = vmatprep.subr.bf16.mxu0 0
    %505 = vmatpush1.bf16.msra.mxu0 0
    %506 = vmatprep.subr.bf16.mxu0 0
    %507 = vmatpush1.bf16.msra.mxu0 0
    %508 = vmatprep.subr.bf16.mxu0 0
    %509 = vmatpush1.bf16.msra.mxu0 0
    %510 = vmatprep.subr.bf16.mxu0 0
    %511 = vmatpush1.bf16.msra.mxu0 0
    %512 = vmatprep.subr.bf16.mxu0 0
    %513 = vmatpush1.bf16.msra.mxu0 0
    %514 = vmatprep.subr.bf16.mxu0 0
    %515 = vmatpush1.bf16.msra.mxu0 0
    %516 = vmatprep.subr.bf16.mxu0 0
    %517 = vmatpush1.bf16.msra.mxu0 0
    %518 = vmatprep.subr.bf16.mxu0 0
    %519 = vmatpush1.bf16.msra.mxu0 0
    %520 = vmatprep.subr.bf16.mxu0 0
    %521 = vmatpush1.bf16.msra.mxu0 0
    %522 = vmatprep.subr.bf16.mxu0 0
    %523 = vmatpush1.bf16.msra.mxu0 0
    %524 = vmatprep.subr.bf16.mxu0 0
    %525 = vmatpush1.bf16.msra.mxu0 0
    %526 = vmatprep.subr.bf16.mxu0 0
    %527 = vmatpush1.bf16.msra.mxu0 0
    %528 = vmatprep.mubr.bf16.mxu0 0
    %529 = vmatmul.mubr.bf16.gmra.mrb[0].mxu0 %v491
    %v530 = vpop.f32.mrb[0].mxu0
    %v531 = vadd.f32 0.0, %v530
    %v532 = vpop.f32.mrb[0].mxu0
    %v533 = vpop.f32.mrb[0].mxu0
    %v534 = vpop.f32.mrb[0].mxu0
    %535 = vdwg.mxu0
    %536 = vrot.lane.b32.xlu0 %v143, 56
    %v537 = vpop.permute.xlu0 %536
    %v539 = vsel %vm147, %v487, 0
    %v542 = vsel %vm272, %v537, 0
    %544 = vmatprep.subr.bf16.mxu0 0
    %545 = vmatpush1.bf16.msra.mxu0 %v542
    %546 = vmatprep.subr.bf16.mxu0 0
    %547 = vmatpush1.bf16.msra.mxu0 0
    %548 = vmatprep.subr.bf16.mxu0 0
    %549 = vmatpush1.bf16.msra.mxu0 0
    %550 = vmatprep.subr.bf16.mxu0 0
    %551 = vmatpush1.bf16.msra.mxu0 0
    %552 = vmatprep.subr.bf16.mxu0 0
    %553 = vmatpush1.bf16.msra.mxu0 0
    %554 = vmatprep.subr.bf16.mxu0 0
    %555 = vmatpush1.bf16.msra.mxu0 0
    %556 = vmatprep.subr.bf16.mxu0 0
    %557 = vmatpush1.bf16.msra.mxu0 0
    %558 = vmatprep.subr.bf16.mxu0 0
    %559 = vmatpush1.bf16.msra.mxu0 0
    %560 = vmatprep.subr.bf16.mxu0 0
    %561 = vmatpush1.bf16.msra.mxu0 0
    %562 = vmatprep.subr.bf16.mxu0 0
    %563 = vmatpush1.bf16.msra.mxu0 0
    %564 = vmatprep.subr.bf16.mxu0 0
    %565 = vmatpush1.bf16.msra.mxu0 0
    %566 = vmatprep.subr.bf16.mxu0 0
    %567 = vmatpush1.bf16.msra.mxu0 0
    %568 = vmatprep.subr.bf16.mxu0 0
    %569 = vmatpush1.bf16.msra.mxu0 0
    %570 = vmatprep.subr.bf16.mxu0 0
    %571 = vmatpush1.bf16.msra.mxu0 0
    %572 = vmatprep.subr.bf16.mxu0 0
    %573 = vmatpush1.bf16.msra.mxu0 0
    %574 = vmatprep.subr.bf16.mxu0 0
    %575 = vmatpush1.bf16.msra.mxu0 0
    %576 = vmatprep.mubr.bf16.mxu0 0
    %577 = vmatmul.mubr.bf16.gmra.mrb[0].mxu0 %v539
    %v578 = vpop.f32.mrb[0].mxu0
    %v579 = vadd.f32 0.0, %v578
    %v580 = vpop.f32.mrb[0].mxu0
    %v581 = vpop.f32.mrb[0].mxu0
    %v582 = vpop.f32.mrb[0].mxu0
    %583 = vdwg.mxu0
    %584 = vrot.lane.b32.xlu0 %v142, 112
    %v585 = vpop.permute.xlu0 %584
    %586 = vrot.lane.b32.xlu0 %v142, 80
    %v587 = vpop.permute.xlu0 %586
    %v589 = vsel %vm147, %v585, 0
    %v592 = vsel %vm147, %v587, 0
    %594 = vmatprep.subr.bf16.mxu0 0
    %595 = vmatpush1.bf16.xpose.msra.mxu0 %v592
    %596 = vmatprep.subr.bf16.mxu0 0
    %597 = vmatpush1.bf16.xpose.msra.mxu0 0
    %598 = vmatprep.subr.bf16.mxu0 0
    %599 = vmatpush1.bf16.xpose.msra.mxu0 0
    %600 = vmatprep.subr.bf16.mxu0 0
    %601 = vmatpush1.bf16.xpose.msra.mxu0 0
    %602 = vmatprep.subr.bf16.mxu0 0
    %603 = vmatpush1.bf16.xpose.msra.mxu0 0
    %604 = vmatprep.subr.bf16.mxu0 0
    %605 = vmatpush1.bf16.xpose.msra.mxu0 0
    %606 = vmatprep.subr.bf16.mxu0 0
    %607 = vmatpush1.bf16.xpose.msra.mxu0 0
    %608 = vmatprep.subr.bf16.mxu0 0
    %609 = vmatpush1.bf16.xpose.msra.mxu0 0
    %610 = vmatprep.subr.bf16.mxu0 0
    %611 = vmatpush1.bf16.xpose.msra.mxu0 0
    %612 = vmatprep.subr.bf16.mxu0 0
    %613 = vmatpush1.bf16.xpose.msra.mxu0 0
    %614 = vmatprep.subr.bf16.mxu0 0
    %615 = vmatpush1.bf16.xpose.msra.mxu0 0
    %616 = vmatprep.subr.bf16.mxu0 0
    %617 = vmatpush1.bf16.xpose.msra.mxu0 0
    %618 = vmatprep.subr.bf16.mxu0 0
    %619 = vmatpush1.bf16.xpose.msra.mxu0 0
    %620 = vmatprep.subr.bf16.mxu0 0
    %621 = vmatpush1.bf16.xpose.msra.mxu0 0
    %622 = vmatprep.subr.bf16.mxu0 0
    %623 = vmatpush1.bf16.xpose.msra.mxu0 0
    %624 = vmatprep.subr.bf16.mxu0 0
    %625 = vmatpush1.bf16.xpose.msra.mxu0 0
    %626 = vmatprep.mubr.bf16.mxu0 0
    %627 = vmatmul.mubr.bf16.gmra.mrb[0].mxu0 %v589
    %v628 = vpop.f32.mrb[0].mxu0
    %v629 = vadd.f32 %v141, %v628
    %v630 = vpop.f32.mrb[0].mxu0
    %v631 = vpop.f32.mrb[0].mxu0
    %v632 = vpop.f32.mrb[0].mxu0
    %633 = vdwg.mxu0
    %634 = vrot.lane.b32.xlu0 %v143, 112
    %v635 = vpop.permute.xlu0 %634
    %636 = vrot.lane.b32.xlu0 %v143, 80
    %v637 = vpop.permute.xlu0 %636
    %v639 = vsel %vm147, %v635, 0
    %v642 = vsel %vm147, %v637, 0
    %644 = vmatprep.subr.bf16.mxu0 0
    %645 = vmatpush1.bf16.xpose.msra.mxu0 %v642
    %646 = vmatprep.subr.bf16.mxu0 0
    %647 = vmatpush1.bf16.xpose.msra.mxu0 0
    %648 = vmatprep.subr.bf16.mxu0 0
    %649 = vmatpush1.bf16.xpose.msra.mxu0 0
    %650 = vmatprep.subr.bf16.mxu0 0
    %651 = vmatpush1.bf16.xpose.msra.mxu0 0
    %652 = vmatprep.subr.bf16.mxu0 0
    %653 = vmatpush1.bf16.xpose.msra.mxu0 0
    %654 = vmatprep.subr.bf16.mxu0 0
    %655 = vmatpush1.bf16.xpose.msra.mxu0 0
    %656 = vmatprep.subr.bf16.mxu0 0
    %657 = vmatpush1.bf16.xpose.msra.mxu0 0
    %658 = vmatprep.subr.bf16.mxu0 0
    %659 = vmatpush1.bf16.xpose.msra.mxu0 0
    %660 = vmatprep.subr.bf16.mxu0 0
    %661 = vmatpush1.bf16.xpose.msra.mxu0 0
    %662 = vmatprep.subr.bf16.mxu0 0
    %663 = vmatpush1.bf16.xpose.msra.mxu0 0
    %664 = vmatprep.subr.bf16.mxu0 0
    %665 = vmatpush1.bf16.xpose.msra.mxu0 0
    %666 = vmatprep.subr.bf16.mxu0 0
    %667 = vmatpush1.bf16.xpose.msra.mxu0 0
    %668 = vmatprep.subr.bf16.mxu0 0
    %669 = vmatpush1.bf16.xpose.msra.mxu0 0
    %670 = vmatprep.subr.bf16.mxu0 0
    %671 = vmatpush1.bf16.xpose.msra.mxu0 0
    %672 = vmatprep.subr.bf16.mxu0 0
    %673 = vmatpush1.bf16.xpose.msra.mxu0 0
    %674 = vmatprep.subr.bf16.mxu0 0
    %675 = vmatpush1.bf16.xpose.msra.mxu0 0
    %676 = vmatprep.mubr.bf16.mxu0 0
    %677 = vmatmul.mubr.bf16.gmra.mrb[0].mxu0 %v639
    %v678 = vpop.f32.mrb[0].mxu0
    %v679 = vadd.f32 %v141, %v678
    %v680 = vpop.f32.mrb[0].mxu0
    %v681 = vpop.f32.mrb[0].mxu0
    %v682 = vpop.f32.mrb[0].mxu0
    %683 = vdwg.mxu0
    %v684 = vsel %vm147, %v629, -inf
    %685 = vmax.xlane.f32.xlu0 %v684
    %v686 = vpop.xlane.xlu0 %685
    %v687 = vsel %vm147, %v679, -inf
    %688 = vmax.xlane.f32.xlu0 %v687
    %v689 = vpop.xlane.xlu0 %688
    %v690 = vsub.f32 %v629, %v686
    %v691 = vsub.f32 %v679, %v689
    %v692 = vmul.f32 %v690, 1.442695
    %v693 = vpow.pop %v692
    %v694 = vmul.f32 %v691, 1.442695
    %v695 = vpow.pop %v694
    %v696 = vsel %vm147, %v693, 0.0
    %697 = vadd.xlane.f32.xlu0 %v696
    %v698 = vpop.xlane.xlu0 %697
    %v699 = vsel %vm147, %v695, 0.0
    %700 = vadd.xlane.f32.xlu0 %v699
    %v701 = vpop.xlane.xlu0 %700
    %v702 = vrcp.pop %v698
    %v703 = vrcp.pop %v701
    %v704 = vmul.f32 %v693, %v702
    %v705 = vmul.f32 %v695, %v703
    %v706 = vpack.c.bf16 %v704, %v704
    %v707 = vpack.c.bf16 %v705, %v705
    %708 = vrot.lane.b32.xlu0 %v142, 48
    %v709 = vpop.permute.xlu0 %708
    %v711 = vsel %vm147, %v706, 0
    %v714 = vsel %vm272, %v709, 0
    %716 = vmatprep.subr.bf16.mxu0 0
    %717 = vmatpush1.bf16.msra.mxu0 %v714
    %718 = vmatprep.subr.bf16.mxu0 0
    %719 = vmatpush1.bf16.msra.mxu0 0
    %720 = vmatprep.subr.bf16.mxu0 0
    %721 = vmatpush1.bf16.msra.mxu0 0
    %722 = vmatprep.subr.bf16.mxu0 0
    %723 = vmatpush1.bf16.msra.mxu0 0
    %724 = vmatprep.subr.bf16.mxu0 0
    %725 = vmatpush1.bf16.msra.mxu0 0
    %726 = vmatprep.subr.bf16.mxu0 0
    %727 = vmatpush1.bf16.msra.mxu0 0
    %728 = vmatprep.subr.bf16.mxu0 0
    %729 = vmatpush1.bf16.msra.mxu0 0
    %730 = vmatprep.subr.bf16.mxu0 0
    %731 = vmatpush1.bf16.msra.mxu0 0
    %732 = vmatprep.subr.bf16.mxu0 0
    %733 = vmatpush1.bf16.msra.mxu0 0
    %734 = vmatprep.subr.bf16.mxu0 0
    %735 = vmatpush1.bf16.msra.mxu0 0
    %736 = vmatprep.subr.bf16.mxu0 0
    %737 = vmatpush1.bf16.msra.mxu0 0
    %738 = vmatprep.subr.bf16.mxu0 0
    %739 = vmatpush1.bf16.msra.mxu0 0
    %740 = vmatprep.subr.bf16.mxu0 0
    %741 = vmatpush1.bf16.msra.mxu0 0
    %742 = vmatprep.subr.bf16.mxu0 0
    %743 = vmatpush1.bf16.msra.mxu0 0
    %744 = vmatprep.subr.bf16.mxu0 0
    %745 = vmatpush1.bf16.msra.mxu0 0
    %746 = vmatprep.subr.bf16.mxu0 0
    %747 = vmatpush1.bf16.msra.mxu0 0
    %748 = vmatprep.mubr.bf16.mxu0 0
    %749 = vmatmul.mubr.bf16.gmra.mrb[0].mxu0 %v711
    %v750 = vpop.f32.mrb[0].mxu0
    %v751 = vadd.f32 0.0, %v750
    %v752 = vpop.f32.mrb[0].mxu0
    %v753 = vpop.f32.mrb[0].mxu0
    %v754 = vpop.f32.mrb[0].mxu0
    %755 = vdwg.mxu0
    %756 = vrot.lane.b32.xlu0 %v143, 48
    %v757 = vpop.permute.xlu0 %756
    %v759 = vsel %vm147, %v707, 0
    %v762 = vsel %vm272, %v757, 0
    %764 = vmatprep.subr.bf16.mxu0 0
    %765 = vmatpush1.bf16.msra.mxu0 %v762
    %766 = vmatprep.subr.bf16.mxu0 0
    %767 = vmatpush1.bf16.msra.mxu0 0
    %768 = vmatprep.subr.bf16.mxu0 0
    %769 = vmatpush1.bf16.msra.mxu0 0
    %770 = vmatprep.subr.bf16.mxu0 0
    %771 = vmatpush1.bf16.msra.mxu0 0
    %772 = vmatprep.subr.bf16.mxu0 0
    %773 = vmatpush1.bf16.msra.mxu0 0
    %774 = vmatprep.subr.bf16.mxu0 0
    %775 = vmatpush1.bf16.msra.mxu0 0
    %776 = vmatprep.subr.bf16.mxu0 0
    %777 = vmatpush1.bf16.msra.mxu0 0
    %778 = vmatprep.subr.bf16.mxu0 0
    %779 = vmatpush1.bf16.msra.mxu0 0
    %780 = vmatprep.subr.bf16.mxu0 0
    %781 = vmatpush1.bf16.msra.mxu0 0
    %782 = vmatprep.subr.bf16.mxu0 0
    %783 = vmatpush1.bf16.msra.mxu0 0
    %784 = vmatprep.subr.bf16.mxu0 0
    %785 = vmatpush1.bf16.msra.mxu0 0
    %786 = vmatprep.subr.bf16.mxu0 0
    %787 = vmatpush1.bf16.msra.mxu0 0
    %788 = vmatprep.subr.bf16.mxu0 0
    %789 = vmatpush1.bf16.msra.mxu0 0
    %790 = vmatprep.subr.bf16.mxu0 0
    %791 = vmatpush1.bf16.msra.mxu0 0
    %792 = vmatprep.subr.bf16.mxu0 0
    %793 = vmatpush1.bf16.msra.mxu0 0
    %794 = vmatprep.subr.bf16.mxu0 0
    %795 = vmatpush1.bf16.msra.mxu0 0
    %796 = vmatprep.mubr.bf16.mxu0 0
    %797 = vmatmul.mubr.bf16.gmra.mrb[0].mxu0 %v759
    %v798 = vpop.f32.mrb[0].mxu0
    %v799 = vadd.f32 0.0, %v798
    %v800 = vpop.f32.mrb[0].mxu0
    %v801 = vpop.f32.mrb[0].mxu0
    %v802 = vpop.f32.mrb[0].mxu0
    %803 = vdwg.mxu0
    %804 = vrot.lane.b32.xlu0 %v142, 104
    %v805 = vpop.permute.xlu0 %804
    %806 = vrot.lane.b32.xlu0 %v142, 72
    %v807 = vpop.permute.xlu0 %806
    %v809 = vsel %vm147, %v805, 0
    %v812 = vsel %vm147, %v807, 0
    %814 = vmatprep.subr.bf16.mxu0 0
    %815 = vmatpush1.bf16.xpose.msra.mxu0 %v812
    %816 = vmatprep.subr.bf16.mxu0 0
    %817 = vmatpush1.bf16.xpose.msra.mxu0 0
    %818 = vmatprep.subr.bf16.mxu0 0
    %819 = vmatpush1.bf16.xpose.msra.mxu0 0
    %820 = vmatprep.subr.bf16.mxu0 0
    %821 = vmatpush1.bf16.xpose.msra.mxu0 0
    %822 = vmatprep.subr.bf16.mxu0 0
    %823 = vmatpush1.bf16.xpose.msra.mxu0 0
    %824 = vmatprep.subr.bf16.mxu0 0
    %825 = vmatpush1.bf16.xpose.msra.mxu0 0
    %826 = vmatprep.subr.bf16.mxu0 0
    %827 = vmatpush1.bf16.xpose.msra.mxu0 0
    %828 = vmatprep.subr.bf16.mxu0 0
    %829 = vmatpush1.bf16.xpose.msra.mxu0 0
    %830 = vmatprep.subr.bf16.mxu0 0
    %831 = vmatpush1.bf16.xpose.msra.mxu0 0
    %832 = vmatprep.subr.bf16.mxu0 0
    %833 = vmatpush1.bf16.xpose.msra.mxu0 0
    %834 = vmatprep.subr.bf16.mxu0 0
    %835 = vmatpush1.bf16.xpose.msra.mxu0 0
    %836 = vmatprep.subr.bf16.mxu0 0
    %837 = vmatpush1.bf16.xpose.msra.mxu0 0
    %838 = vmatprep.subr.bf16.mxu0 0
    %839 = vmatpush1.bf16.xpose.msra.mxu0 0
    %840 = vmatprep.subr.bf16.mxu0 0
    %841 = vmatpush1.bf16.xpose.msra.mxu0 0
    %842 = vmatprep.subr.bf16.mxu0 0
    %843 = vmatpush1.bf16.xpose.msra.mxu0 0
    %844 = vmatprep.subr.bf16.mxu0 0
    %845 = vmatpush1.bf16.xpose.msra.mxu0 0
    %846 = vmatprep.mubr.bf16.mxu0 0
    %847 = vmatmul.mubr.bf16.gmra.mrb[0].mxu0 %v809
    %v848 = vpop.f32.mrb[0].mxu0
    %v849 = vadd.f32 %v141, %v848
    %v850 = vpop.f32.mrb[0].mxu0
    %v851 = vpop.f32.mrb[0].mxu0
    %v852 = vpop.f32.mrb[0].mxu0
    %853 = vdwg.mxu0
    %854 = vrot.lane.b32.xlu0 %v143, 104
    %v855 = vpop.permute.xlu0 %854
    %856 = vrot.lane.b32.xlu0 %v143, 72
    %v857 = vpop.permute.xlu0 %856
    %v859 = vsel %vm147, %v855, 0
    %v862 = vsel %vm147, %v857, 0
    %864 = vmatprep.subr.bf16.mxu0 0
    %865 = vmatpush1.bf16.xpose.msra.mxu0 %v862
    %866 = vmatprep.subr.bf16.mxu0 0
    %867 = vmatpush1.bf16.xpose.msra.mxu0 0
    %868 = vmatprep.subr.bf16.mxu0 0
    %869 = vmatpush1.bf16.xpose.msra.mxu0 0
    %870 = vmatprep.subr.bf16.mxu0 0
    %871 = vmatpush1.bf16.xpose.msra.mxu0 0
    %872 = vmatprep.subr.bf16.mxu0 0
    %873 = vmatpush1.bf16.xpose.msra.mxu0 0
    %874 = vmatprep.subr.bf16.mxu0 0
    %875 = vmatpush1.bf16.xpose.msra.mxu0 0
    %876 = vmatprep.subr.bf16.mxu0 0
    %877 = vmatpush1.bf16.xpose.msra.mxu0 0
    %878 = vmatprep.subr.bf16.mxu0 0
    %879 = vmatpush1.bf16.xpose.msra.mxu0 0
    %880 = vmatprep.subr.bf16.mxu0 0
    %881 = vmatpush1.bf16.xpose.msra.mxu0 0
    %882 = vmatprep.subr.bf16.mxu0 0
    %883 = vmatpush1.bf16.xpose.msra.mxu0 0
    %884 = vmatprep.subr.bf16.mxu0 0
    %885 = vmatpush1.bf16.xpose.msra.mxu0 0
    %886 = vmatprep.subr.bf16.mxu0 0
    %887 = vmatpush1.bf16.xpose.msra.mxu0 0
    %888 = vmatprep.subr.bf16.mxu0 0
    %889 = vmatpush1.bf16.xpose.msra.mxu0 0
    %890 = vmatprep.subr.bf16.mxu0 0
    %891 = vmatpush1.bf16.xpose.msra.mxu0 0
    %892 = vmatprep.subr.bf16.mxu0 0
    %893 = vmatpush1.bf16.xpose.msra.mxu0 0
    %894 = vmatprep.subr.bf16.mxu0 0
    %895 = vmatpush1.bf16.xpose.msra.mxu0 0
    %896 = vmatprep.mubr.bf16.mxu0 0
    %897 = vmatmul.mubr.bf16.gmra.mrb[0].mxu0 %v859
    %v898 = vpop.f32.mrb[0].mxu0
    %v899 = vadd.f32 %v141, %v898
    %v900 = vpop.f32.mrb[0].mxu0
    %v901 = vpop.f32.mrb[0].mxu0
    %v902 = vpop.f32.mrb[0].mxu0
    %903 = vdwg.mxu0
    %v904 = vsel %vm147, %v849, -inf
    %905 = vmax.xlane.f32.xlu0 %v904
    %v906 = vpop.xlane.xlu0 %905
    %v907 = vsel %vm147, %v899, -inf
    %908 = vmax.xlane.f32.xlu0 %v907
    %v909 = vpop.xlane.xlu0 %908
    %v910 = vsub.f32 %v849, %v906
    %v911 = vsub.f32 %v899, %v909
    %v912 = vmul.f32 %v910, 1.442695
    %v913 = vpow.pop %v912
    %v914 = vmul.f32 %v911, 1.442695
    %v915 = vpow.pop %v914
    %v916 = vsel %vm147, %v913, 0.0
    %917 = vadd.xlane.f32.xlu0 %v916
    %v918 = vpop.xlane.xlu0 %917
    %v919 = vsel %vm147, %v915, 0.0
    %920 = vadd.xlane.f32.xlu0 %v919
    %v921 = vpop.xlane.xlu0 %920
    %v922 = vrcp.pop %v918
    %v923 = vrcp.pop %v921
    %v924 = vmul.f32 %v913, %v922
    %v925 = vmul.f32 %v915, %v923
    %v926 = vpack.c.bf16 %v924, %v924
    %v927 = vpack.c.bf16 %v925, %v925
    %928 = vrot.lane.b32.xlu0 %v142, 40
    %v929 = vpop.permute.xlu0 %928
    %v931 = vsel %vm147, %v926, 0
    %v934 = vsel %vm272, %v929, 0
    %936 = vmatprep.subr.bf16.mxu0 0
    %937 = vmatpush1.bf16.msra.mxu0 %v934
    %938 = vmatprep.subr.bf16.mxu0 0
    %939 = vmatpush1.bf16.msra.mxu0 0
    %940 = vmatprep.subr.bf16.mxu0 0
    %941 = vmatpush1.bf16.msra.mxu0 0
    %942 = vmatprep.subr.bf16.mxu0 0
    %943 = vmatpush1.bf16.msra.mxu0 0
    %944 = vmatprep.subr.bf16.mxu0 0
    %945 = vmatpush1.bf16.msra.mxu0 0
    %946 = vmatprep.subr.bf16.mxu0 0
    %947 = vmatpush1.bf16.msra.mxu0 0
    %948 = vmatprep.subr.bf16.mxu0 0
    %949 = vmatpush1.bf16.msra.mxu0 0
    %950 = vmatprep.subr.bf16.mxu0 0
    %951 = vmatpush1.bf16.msra.mxu0 0
    %952 = vmatprep.subr.bf16.mxu0 0
    %953 = vmatpush1.bf16.msra.mxu0 0
    %954 = vmatprep.subr.bf16.mxu0 0
    %955 = vmatpush1.bf16.msra.mxu0 0
    %956 = vmatprep.subr.bf16.mxu0 0
    %957 = vmatpush1.bf16.msra.mxu0 0
    %958 = vmatprep.subr.bf16.mxu0 0
    %959 = vmatpush1.bf16.msra.mxu0 0
    %960 = vmatprep.subr.bf16.mxu0 0
    %961 = vmatpush1.bf16.msra.mxu0 0
    %962 = vmatprep.subr.bf16.mxu0 0
    %963 = vmatpush1.bf16.msra.mxu0 0
    %964 = vmatprep.subr.bf16.mxu0 0
    %965 = vmatpush1.bf16.msra.mxu0 0
    %966 = vmatprep.subr.bf16.mxu0 0
    %967 = vmatpush1.bf16.msra.mxu0 0
    %968 = vmatprep.mubr.bf16.mxu0 0
    %969 = vmatmul.mubr.bf16.gmra.mrb[0].mxu0 %v931
    %v970 = vpop.f32.mrb[0].mxu0
    %v971 = vadd.f32 0.0, %v970
    %v972 = vpop.f32.mrb[0].mxu0
    %v973 = vpop.f32.mrb[0].mxu0
    %v974 = vpop.f32.mrb[0].mxu0
    %975 = vdwg.mxu0
    %976 = vrot.lane.b32.xlu0 %v143, 40
    %v977 = vpop.permute.xlu0 %976
    %v979 = vsel %vm147, %v927, 0
    %v982 = vsel %vm272, %v977, 0
    %984 = vmatprep.subr.bf16.mxu0 0
    %985 = vmatpush1.bf16.msra.mxu0 %v982
    %986 = vmatprep.subr.bf16.mxu0 0
    %987 = vmatpush1.bf16.msra.mxu0 0
    %988 = vmatprep.subr.bf16.mxu0 0
    %989 = vmatpush1.bf16.msra.mxu0 0
    %990 = vmatprep.subr.bf16.mxu0 0
    %991 = vmatpush1.bf16.msra.mxu0 0
    %992 = vmatprep.subr.bf16.mxu0 0
    %993 = vmatpush1.bf16.msra.mxu0 0
    %994 = vmatprep.subr.bf16.mxu0 0
    %995 = vmatpush1.bf16.msra.mxu0 0
    %996 = vmatprep.subr.bf16.mxu0 0
    %997 = vmatpush1.bf16.msra.mxu0 0
    %998 = vmatprep.subr.bf16.mxu0 0
    %999 = vmatpush1.bf16.msra.mxu0 0
    %1000 = vmatprep.subr.bf16.mxu0 0
    %1001 = vmatpush1.bf16.msra.mxu0 0
    %1002 = vmatprep.subr.bf16.mxu0 0
    %1003 = vmatpush1.bf16.msra.mxu0 0
    %1004 = vmatprep.subr.bf16.mxu0 0
    %1005 = vmatpush1.bf16.msra.mxu0 0
    %1006 = vmatprep.subr.bf16.mxu0 0
    %1007 = vmatpush1.bf16.msra.mxu0 0
    %1008 = vmatprep.subr.bf16.mxu0 0
    %1009 = vmatpush1.bf16.msra.mxu0 0
    %1010 = vmatprep.subr.bf16.mxu0 0
    %1011 = vmatpush1.bf16.msra.mxu0 0
    %1012 = vmatprep.subr.bf16.mxu0 0
    %1013 = vmatpush1.bf16.msra.mxu0 0
    %1014 = vmatprep.subr.bf16.mxu0 0
    %1015 = vmatpush1.bf16.msra.mxu0 0
    %1016 = vmatprep.mubr.bf16.mxu0 0
    %1017 = vmatmul.mubr.bf16.gmra.mrb[0].mxu0 %v979
    %v1018 = vpop.f32.mrb[0].mxu0
    %v1019 = vadd.f32 0.0, %v1018
    %v1020 = vpop.f32.mrb[0].mxu0
    %v1021 = vpop.f32.mrb[0].mxu0
    %v1022 = vpop.f32.mrb[0].mxu0
    %1023 = vdwg.mxu0
    %1026 = vrot.lane.b32.xlu0 %v531, 8
    %v1027 = vpop.permute.xlu0 %1026
    %1028 = vrot.lane.b32.xlu0 %v579, 8
    %v1029 = vpop.permute.xlu0 %1028
    %1034 = vrot.lane.b32.xlu0 %v751, 16
    %v1035 = vpop.permute.xlu0 %1034
    %1036 = vrot.lane.b32.xlu0 %v799, 16
    %v1037 = vpop.permute.xlu0 %1036
    %1042 = vrot.lane.b32.xlu0 %v971, 24
    %v1043 = vpop.permute.xlu0 %1042
    %1044 = vrot.lane.b32.xlu0 %v1019, 24
    %v1045 = vpop.permute.xlu0 %1044
    %v1048 = vsel %vm147, %v311, %v1027
    %v1049 = vsel %vm147, %v359, %v1029
    %vm1050 = vcmask 130048
    %v1051 = vsel %vm1050, %v1048, %v1035
    %v1052 = vsel %vm1050, %v1049, %v1037
    %vm1053 = vcmask 195584
    %v1054 = vsel %vm1053, %v1051, %v1043
    %v1055 = vsel %vm1053, %v1052, %v1045
    %v1056 = vpack.c.bf16 %v1055, %v1054
    %v1057 = vld [vmem:[#allocation7] sm:$0xf]
    %v1058 = vld [vmem:[#allocation7 + $0x4] sm:$0xf]
    %v1059 = vld [vmem:[#allocation7 + $0x8] sm:$0xf]
    %v1060 = vld [vmem:[#allocation7 + $0xc] sm:$0xf]
    %v1061 = vld [vmem:[%s4] sm:$0x1]
    %v1063 = vlaneseq
    %v1064 = vshrl.u32 %v1063, 7
    %v1065 = vsub.s32 0, %v1064
    %v1066 = vrot.slane %v1061, %v1065
    %v1072 = vunpack.c.l.b16 %v1057
    %v1073 = vunpack.c.l.b16 %v1058
    %v1074 = vunpack.c.l.b16 %v1059
    %v1075 = vunpack.c.l.b16 %v1060
    %v1076 = vpack.c.b16 %v1073, %v1072
    %v1077 = vpack.c.b16 %v1075, %v1074
    %v1081 = vsel %vm96, %v1056, 0
    %1083 = vmatprep.subr.bf16.mxu0 0
    %1084 = vmatpush1.bf16.msra.mxu0 %v1076
    %1085 = vmatprep.subr.bf16.mxu0 0
    %1086 = vmatpush1.bf16.msra.mxu0 %v1077
    %1087 = vmatprep.subr.bf16.mxu0 0
    %1088 = vmatpush1.bf16.msra.mxu0 0
    %1089 = vmatprep.subr.bf16.mxu0 0
    %1090 = vmatpush1.bf16.msra.mxu0 0
    %1091 = vmatprep.subr.bf16.mxu0 0
    %1092 = vmatpush1.bf16.msra.mxu0 0
    %1093 = vmatprep.subr.bf16.mxu0 0
    %1094 = vmatpush1.bf16.msra.mxu0 0
    %1095 = vmatprep.subr.bf16.mxu0 0
    %1096 = vmatpush1.bf16.msra.mxu0 0
    %1097 = vmatprep.subr.bf16.mxu0 0
    %1098 = vmatpush1.bf16.msra.mxu0 0
    %1099 = vmatprep.subr.bf16.mxu0 0
    %1100 = vmatpush1.bf16.msra.mxu0 0
    %1101 = vmatprep.subr.bf16.mxu0 0
    %1102 = vmatpush1.bf16.msra.mxu0 0
    %1103 = vmatprep.subr.bf16.mxu0 0
    %1104 = vmatpush1.bf16.msra.mxu0 0
    %1105 = vmatprep.subr.bf16.mxu0 0
    %1106 = vmatpush1.bf16.msra.mxu0 0
    %1107 = vmatprep.subr.bf16.mxu0 0
    %1108 = vmatpush1.bf16.msra.mxu0 0
    %1109 = vmatprep.subr.bf16.mxu0 0
    %1110 = vmatpush1.bf16.msra.mxu0 0
    %1111 = vmatprep.subr.bf16.mxu0 0
    %1112 = vmatpush1.bf16.msra.mxu0 0
    %1113 = vmatprep.subr.bf16.mxu0 0
    %1114 = vmatpush1.bf16.msra.mxu0 0
    %1115 = vmatprep.mubr.bf16.mxu0 0
    %1116 = vmatmul.mubr.bf16.gmra.mrb[0].mxu0 %v1081
    %v1117 = vpop.f32.mrb[0].mxu0
    %v1118 = vadd.f32 %v1066, %v1117
    %v1119 = vpop.f32.mrb[0].mxu0
    %v1120 = vpop.f32.mrb[0].mxu0
    %v1121 = vadd.f32 %v1066, %v1120
    %v1122 = vpop.f32.mrb[0].mxu0
    %1123 = vdwg.mxu0
    %vm1124 = vcmask 253952
    %1125 = vst.msk [vmem:[#allocation8] sm:$0x1] %vm1124, %v1118
    %v1128 = vunpack.c.l.s4 1983009808
    %v1129 = vunpack.c.0.s8 %v1128
    %v1130 = vlaneseq
    %v1131 = vshrl.u32 %v1130, 7
    %v1132 = vsub.s32 %v1129, %v1131
    %v1133 = vrot.slane %v1118, %v1132
    %v1134 = vrot.slane %v1133, 7
    %v1135 = vrot.slane %v1134, 2
    %1136 = vrot.lane.b32.xlu0 %v1135, 32
    %v1137 = vpop.permute.xlu0 %1136
    %vm1139 = vcmask 516352
    %1140 = vst.msk [vmem:[#allocation8] sm:$0x1] %vm1139, %v1137
    %v1141 = vcombine.high %v1133, %v1133
    %1142 = vrot.lane.b32.xlu0 %v1141, 64
    %v1143 = vpop.permute.xlu0 %1142
    %vm1145 = vcmask 778752
    %1146 = vst.msk [vmem:[#allocation8] sm:$0x1] %vm1145, %v1143
    %v1147 = vrot.slane %v1141, 7
    %v1148 = vrot.slane %v1147, 2
    %1149 = vrot.lane.b32.xlu0 %v1148, 96
    %v1150 = vpop.permute.xlu0 %1149
    %vm1152 = vcmask 1041152
    %1153 = vst.msk [vmem:[#allocation8] sm:$0x1] %vm1152, %v1150
    %v1154 = vcombine.high %v1118, %v1118
    %v1156 = vunpack.c.l.s4 1983009808
    %v1157 = vunpack.c.0.s8 %v1156
    %v1158 = vlaneseq
    %v1159 = vshrl.u32 %v1158, 7
    %v1160 = vsub.s32 %v1157, %v1159
    %v1161 = vrot.slane %v1154, %v1160
    %1163 = vst.msk [vmem:[#allocation8 + $0x2] sm:$0x1] %vm1124, %v1161
    %v1164 = vrot.slane %v1161, 7
    %v1165 = vrot.slane %v1164, 2
    %1166 = vrot.lane.b32.xlu0 %v1165, 32
    %v1167 = vpop.permute.xlu0 %1166
    %1169 = vst.msk [vmem:[#allocation8 + $0x2] sm:$0x1] %vm1139, %v1167
    %v1170 = vcombine.high %v1161, %v1161
    %1171 = vrot.lane.b32.xlu0 %v1170, 64
    %v1172 = vpop.permute.xlu0 %1171
    %1174 = vst.msk [vmem:[#allocation8 + $0x2] sm:$0x1] %vm1145, %v1172
    %v1175 = vrot.slane %v1170, 7
    %v1176 = vrot.slane %v1175, 2
    %1177 = vrot.lane.b32.xlu0 %v1176, 96
    %v1178 = vpop.permute.xlu0 %1177
    %1180 = vst.msk [vmem:[#allocation8 + $0x2] sm:$0x1] %vm1152, %v1178
    %1181 = vst.msk [vmem:[#allocation8 + $0x1] sm:$0x1] %vm1124, %v1121
    %v1184 = vunpack.c.l.s4 1983009808
    %v1185 = vunpack.c.0.s8 %v1184
    %v1186 = vlaneseq
    %v1187 = vshrl.u32 %v1186, 7
    %v1188 = vsub.s32 %v1185, %v1187
    %v1189 = vrot.slane %v1121, %v1188
    %v1190 = vrot.slane %v1189, 7
    %v1191 = vrot.slane %v1190, 2
    %1192 = vrot.lane.b32.xlu0 %v1191, 32
    %v1193 = vpop.permute.xlu0 %1192
    %1195 = vst.msk [vmem:[#allocation8 + $0x1] sm:$0x1] %vm1139, %v1193
    %v1196 = vcombine.high %v1189, %v1189
    %1197 = vrot.lane.b32.xlu0 %v1196, 64
    %v1198 = vpop.permute.xlu0 %1197
    %1200 = vst.msk [vmem:[#allocation8 + $0x1] sm:$0x1] %vm1145, %v1198
    %v1201 = vrot.slane %v1196, 7
    %v1202 = vrot.slane %v1201, 2
    %1203 = vrot.lane.b32.xlu0 %v1202, 96
    %v1204 = vpop.permute.xlu0 %1203
    %1206 = vst.msk [vmem:[#allocation8 + $0x1] sm:$0x1] %vm1152, %v1204
    %v1207 = vcombine.high %v1121, %v1121
    %v1209 = vunpack.c.l.s4 1983009808
    %v1210 = vunpack.c.0.s8 %v1209
    %v1211 = vlaneseq
    %v1212 = vshrl.u32 %v1211, 7
    %v1213 = vsub.s32 %v1210, %v1212
    %v1214 = vrot.slane %v1207, %v1213
    %1216 = vst.msk [vmem:[#allocation8 + $0x3] sm:$0x1] %vm1124, %v1214
    %v1217 = vrot.slane %v1214, 7
    %v1218 = vrot.slane %v1217, 2
    %1219 = vrot.lane.b32.xlu0 %v1218, 32
    %v1220 = vpop.permute.xlu0 %1219
    %1222 = vst.msk [vmem:[#allocation8 + $0x3] sm:$0x1] %vm1139, %v1220
    %v1223 = vcombine.high %v1214, %v1214
    %1224 = vrot.lane.b32.xlu0 %v1223, 64
    %v1225 = vpop.permute.xlu0 %1224
    %1227 = vst.msk [vmem:[#allocation8 + $0x3] sm:$0x1] %vm1145, %v1225
    %v1228 = vrot.slane %v1223, 7
    %v1229 = vrot.slane %v1228, 2
    %1230 = vrot.lane.b32.xlu0 %v1229, 96
    %v1231 = vpop.permute.xlu0 %1230
    %1233 = vst.msk [vmem:[#allocation8 + $0x3] sm:$0x1] %vm1152, %v1231
    // Predicated region
    $region38: #{tpu_custom_call.1} parent=1 // pred_check
      _
    $region39: #{tpu_custom_call.1} parent=1 // pred_check_branch
      %1235 = sbr.rel (0) target = $region41
    $region40: #{tpu_custom_call.1} parent=1 // pred_region
      %s1237 = ssub.s32 64, 64
      %1238 = vsyncadd [#allocation4], %s1237
      %s1240 = sshll.u32 [#allocation8], 4
      %s1241 = int_to_ptr.vmem [resolvable:$true] %s1240
      %1243 = dma.vmem_to_hbm [thread:$0]  %s1241, 64, %s6, [#allocation4]
    $region41: #{tpu_custom_call.1} parent=1 // pred_fallthru
      _
    // Predicated region
    $region42: #{tpu_custom_call.1} parent=1 // pred_check
      _
    $region43: #{tpu_custom_call.1} parent=1 // pred_check_branch
      %1245 = sbr.rel (0) target = $region45
    $region44: #{tpu_custom_call.1} parent=1 // pred_region
      %1246 = dma.done [#allocation4], 64
    $region45: #{tpu_custom_call.1} parent=1 // pred_fallthru
      _
    %1247 = vsyncpa [#allocation3], 1
    %1248 = vsyncpa [#allocation6], 1
    %1249 = vsyncpa [#allocation4], 1

</llo_original>
